<compile_context>
chip_gen: v6e
topology: v6e:2x2x1
jax: 0.10.0
libtpu: 0.0.40
codegen_flags: <defaults>
</compile_context>

<pallas_src>
import functools

import numpy as np
import jax
import jax.numpy as jnp
from jax import lax
from jax.experimental import pallas as pl
from jax.experimental.pallas import tpu as pltpu

NUM_ZONES = 8
PERSON_DIM = 8
EMBEDDING_DIM = 64          # zone_embeddings are unused by forward(); not materialized
DIFFUSION_STRENGTH = 0.2
PENALTY = 1000.0

# bias-slab lane offsets (each 128-lane aligned so every kernel slice starts
# at a vreg boundary)
_B1_OFF, _B2_OFF, _B3_OFF, _B4_OFF = 0, 256, 384, 512
_C1_OFF, _C2_OFF, _C3_OFF = 640, 768, 896
_BIAS_W = 1024


def _traj_kernel(data8_ref, slab256_ref, slab128_ref, slab8_ref, bias_ref,
                 w2_ref, w3_ref, v2_ref,
                 logits_out_ref, hard_out_ref,
                 *, num_zones, num_steps, person_dim,
                 diffusion_strength, penalty):
    f32 = jnp.float32
    nz, T, P = num_zones, num_steps, person_dim

    # ---- unpack the packed input slabs (all static slices) ----
    person = data8_ref[0:1, 0:P]                       # (1, P)
    gumbel = data8_ref[1:1 + T, 0:nz]                  # (T, nz)
    norm_t = data8_ref[1 + T:1 + 2 * T, 0:1]           # (T, 1)

    w1p = slab256_ref[0:P, :]                          # (P, 256)
    w1t = slab256_ref[P:P + 1, :]                      # (1, 256)
    w1z = slab256_ref[P + 1:P + 1 + nz, :]             # (nz, 256)

    v1p = slab128_ref[0:P, :]                          # (P, 128)
    v1t = slab128_ref[P:P + 1, :]                      # (1, 128)

    w4 = slab8_ref[0:64, :]                            # (64, nz)
    v3 = slab8_ref[64:128, :]                          # (64, nz)
    adj = slab8_ref[128:128 + nz, :]                   # (nz, nz)

    b1 = bias_ref[0:1, _B1_OFF:_B1_OFF + 256]
    b2 = bias_ref[0:1, _B2_OFF:_B2_OFF + 128]
    b3 = bias_ref[0:1, _B3_OFF:_B3_OFF + 64]
    b4 = bias_ref[0:1, _B4_OFF:_B4_OFF + nz]
    c1 = bias_ref[0:1, _C1_OFF:_C1_OFF + 128]
    c2 = bias_ref[0:1, _C2_OFF:_C2_OFF + 64]
    c3 = bias_ref[0:1, _C3_OFF:_C3_OFF + nz]

    # ---- hoisted precompute (runs once, fully off the serial chain) ----
    # trajectory_net layer 1, person + time part (bias folded in):    (T, 256)
    pre_h1 = (jnp.dot(person, w1p, preferred_element_type=f32)
              + b1 + norm_t * w1t)

    # diversity_net: Linear(9,128)-ReLU-Linear(128,64)-ReLU-Linear(64,8)-Tanh
    d1 = jnp.maximum(jnp.dot(person, v1p, preferred_element_type=f32)
                     + c1 + norm_t * v1t, 0.0)                      # (T, 128)
    d2 = jnp.maximum(jnp.dot(d1, v2_ref[...], preferred_element_type=f32)
                     + c2, 0.0)                                     # (T, 64)
    div = jnp.tanh(jnp.dot(d2, v3, preferred_element_type=f32) + c3)  # (T, nz)
    bias_all = diffusion_strength * div + b4                        # (T, nz)

    # physics penalty per current zone: -penalty * (1 - adjacency_row)
    adj_pen = -penalty * (1.0 - adj)                                # (nz, nz)

    # Full (t, zone) logits table: h1 is separable in (t, zone), so every
    # matmul runs once at M = T*nz instead of 3 serialized M=1 matmuls/step.
    h1_all = jnp.maximum(pre_h1[:, None, :] + w1z[None, :, :], 0.0)  # (T, nz, 256)
    h1_all = h1_all.reshape(T * nz, 256)
    h2_all = jnp.maximum(jnp.dot(h1_all, w2_ref[...],
                                 preferred_element_type=f32) + b2, 0.0)   # (T*nz,128)
    h3_all = jnp.maximum(jnp.dot(h2_all, w3_ref[...],
                                 preferred_element_type=f32) + b3, 0.0)   # (T*nz,64)
    base_all = jnp.dot(h3_all, w4, preferred_element_type=f32)            # (T*nz,nz)

    # row t*nz + z == constrained logits at step t given current zone z
    extra_clean = (bias_all[:, None, :] + adj_pen[None, :, :]).reshape(T * nz, nz)
    extra_noisy = ((bias_all + gumbel)[:, None, :]
                   + adj_pen[None, :, :]).reshape(T * nz, nz)
    table = base_all + extra_clean                                  # clean logits
    noisy = base_all + extra_noisy                                  # + gumbel (argmax)

    # ---- sequential rollout: pure select / argmax per step (XLU-bound) ----
    zone_iota_row = lax.broadcasted_iota(jnp.int32, (1, nz), 1)
    zone_iota_col = lax.broadcasted_iota(jnp.int32, (nz, 1), 0)
    step_iota_col = lax.broadcasted_iota(jnp.int32, (T, 1), 0)

    logits_acc = jnp.zeros((T, nz), f32)
    hard_acc = jnp.zeros((T, nz), f32)
    hidx = jnp.zeros((1, 1), jnp.int32)      # current_zone_soft[0] = 1 -> argmax 0

    for i in range(T):                       # fully unrolled: T small & static
        blk_clean = table[i * nz:(i + 1) * nz, :]    # (nz, nz) candidate block
        blk_noisy = noisy[i * nz:(i + 1) * nz, :]
        cur_mask = (zone_iota_col == hidx)           # (nz, 1) one-hot row selector

        # masked cross-sublane sum == row-select of the candidate block
        sel_clean = jnp.sum(jnp.where(cur_mask, blk_clean, 0.0),
                            axis=0, keepdims=True)   # (1, nz)
        sel_noisy = jnp.sum(jnp.where(cur_mask, blk_noisy, 0.0),
                            axis=0, keepdims=True)   # (1, nz)

        # Gumbel-softmax (hard): argmax is invariant to the monotone (x+g)/tau
        # map (tau > 0) and pallas_call has no VJP, so the softmax is
        # forward-dead and skipped.  First-index tie rule matches torch.
        vmax = jnp.max(sel_noisy, axis=-1, keepdims=True)
        hidx = jnp.min(jnp.where(sel_noisy >= vmax, zone_iota_row, nz),
                       axis=-1, keepdims=True)
        hard_row = (zone_iota_row == hidx).astype(f32)

        step_mask = (step_iota_col == i)             # (T, 1)
        logits_acc = jnp.where(step_mask, sel_clean, logits_acc)
        hard_acc = jnp.where(step_mask, hard_row, hard_acc)

    # single store of each output after the loop
    logits_out_ref[...] = logits_acc
    hard_out_ref[...] = hard_acc


def init_params(key, person_dim=PERSON_DIM, num_zones=NUM_ZONES):
    """Deterministic synthetic init matching the module's Linear shapes."""
    keys = jax.random.split(key, 7)

    def linear(k, fi, fo):
        k1, k2 = jax.random.split(k)
        bound = 1.0 / np.sqrt(fi)
        w = jax.random.uniform(k1, (fi, fo), jnp.float32, -bound, bound)
        b = jax.random.uniform(k2, (1, fo), jnp.float32, -bound, bound)
        return w, b

    W1, b1 = linear(keys[0], person_dim + 1 + num_zones, 256)
    W2, b2 = linear(keys[1], 256, 128)
    W3, b3 = linear(keys[2], 128, 64)
    W4, b4 = linear(keys[3], 64, num_zones)
    V1, c1 = linear(keys[4], person_dim + 1, 128)
    V2, c2 = linear(keys[5], 128, 64)
    V3, c3 = linear(keys[6], 64, num_zones)

    return dict(
        w1p=W1[:person_dim], w1t=W1[person_dim:person_dim + 1],
        w1z=W1[person_dim + 1:], b1=b1,
        w2=W2, b2=b2, w3=W3, b3=b3, w4=W4, b4=b4,
        v1p=V1[:person_dim], v1t=V1[person_dim:], c1=c1,
        v2=V2, c2=c2, v3=V3, c3=c3,
        # gumbel_temperature: learnable in torch, but forward outputs are
        # invariant to it (argmax of a positively scaled shift), so unused here.
        tau=jnp.array([1.0], jnp.float32),
    )


def _pad_cols(x, width):
    x = jnp.asarray(x, jnp.float32)
    pad = width - x.shape[1]
    if pad > 0:
        x = jnp.pad(x, ((0, 0), (0, pad)))
    return x


def physics_diffusion_forward(person_attrs, times, edge_index, params,
                              gumbel_noise, diffusion_strength=DIFFUSION_STRENGTH):
    """Equivalent of PhysicsDiffusionTrajectoryPredictor.forward(training=True).

    Returns (trajectory_logits: (T, num_zones) f32, trajectory_zones: (T,) i32).
    """
    T = int(times.shape[0])
    nz = NUM_ZONES
    P = PERSON_DIM
    lanes = max(P, nz)

    # --- glue: adjacency from edge_index (mirrors set_adjacency_matrix) ---
    adj_np = np.zeros((nz, nz), np.float32)
    ei = np.asarray(edge_index)
    for e in range(ei.shape[1]):
        u, v = int(ei[0, e]), int(ei[1, e])
        adj_np[u, v] = 1.0
        adj_np[v, u] = 1.0
    np.fill_diagonal(adj_np, 1.0)
    adj = jnp.asarray(adj_np)

    denom = times[-1]
    safe = jnp.where(denom > 0, denom, 1.0)
    norm_times = jnp.where(denom > 0, times / safe,
                           jnp.zeros_like(times)).astype(jnp.float32)

    # --- pack the many small inputs into a handful of VMEM buffers ---
    data8 = jnp.concatenate([
        _pad_cols(person_attrs.reshape(1, -1), lanes),          # row 0
        _pad_cols(gumbel_noise.reshape(T, nz), lanes),          # rows 1..T
        _pad_cols(norm_times.reshape(T, 1), lanes),             # rows T+1..2T
    ], axis=0)                                                  # (1+2T, lanes)

    slab256 = jnp.concatenate(
        [params["w1p"], params["w1t"], params["w1z"]], axis=0)  # (P+1+nz, 256)
    slab128 = jnp.concatenate(
        [params["v1p"], params["v1t"]], axis=0)                 # (P+1, 128)
    slab8 = jnp.concatenate(
        [params["w4"], params["v3"], adj], axis=0)              # (128+nz, nz)

    bias_slab = jnp.concatenate([
        _pad_cols(params["b1"], 256),
        _pad_cols(params["b2"], 128),
        _pad_cols(params["b3"], 128),
        _pad_cols(params["b4"], 128),
        _pad_cols(params["c1"], 128),
        _pad_cols(params["c2"], 128),
        _pad_cols(params["c3"], 128),
    ], axis=1)                                                  # (1, 1024)
    assert bias_slab.shape == (1, _BIAS_W)

    vmem = pl.BlockSpec(memory_space=pltpu.MemorySpace.VMEM)
    kernel = functools.partial(_traj_kernel, num_zones=nz, num_steps=T,
                               person_dim=P,
                               diffusion_strength=diffusion_strength,
                               penalty=PENALTY)

    # TODO(synk): if many persons are evaluated, add a leading "parallel"
    # person grid axis (weights with constant index_map) to occupy both
    # TensorCores on v7x and amortize the per-call weight DMAs.
    logits, hard = pl.pallas_call(
        kernel,
        out_shape=(jax.ShapeDtypeStruct((T, nz), jnp.float32),
                   jax.ShapeDtypeStruct((T, nz), jnp.float32)),
        in_specs=[vmem] * 8,
        out_specs=(vmem, vmem),
    )(data8, slab256, slab128, slab8, bias_slab,
      params["w2"], params["w3"], params["v2"])

    zones = jnp.argmax(hard, axis=-1).astype(jnp.int32)
    return logits, zones

# TODO(synk): eval-mode branches (forward_single_trajectory with torch.multinomial
# sampling and seeded extra noise) are data-dependent CPU-style sampling loops
# and are not implemented; only the training=True path is kernelized.


if __name__ == "__main__":
    key = jax.random.PRNGKey(0)
    k_person, k_param, k_gumbel = jax.random.split(key, 3)

    person_attrs = jax.random.normal(k_person, (PERSON_DIM,), jnp.float32)
    T = 8
    times = jnp.linspace(0.0, 24.0, T).astype(jnp.float32)
    # ring graph over the 8 zones
    edge_index = np.array([[i for i in range(NUM_ZONES)],
                           [(i + 1) % NUM_ZONES for i in range(NUM_ZONES)]],
                          dtype=np.int32)

    params = init_params(k_param)

    # Gumbel(0,1) noise, one draw per step (only the hard sample affects outputs)
    u = jax.random.uniform(k_gumbel, (T, NUM_ZONES), jnp.float32, 1e-6, 1.0 - 1e-6)
    gumbel_noise = -jnp.log(-jnp.log(u))

    logits, zones = physics_diffusion_forward(person_attrs, times, edge_index,
                                              params, gumbel_noise)
    jax.block_until_ready((logits, zones))

    assert logits.shape == (T, NUM_ZONES) and logits.dtype == jnp.float32
    assert zones.shape == (T,)
    print("KERNEL_OK")
</pallas_src>

<mosaic_0001>
module attributes {stable_mosaic.version = 11 : i64} {
  func.func @_traj_kernel(%arg0: memref<17x8xf32, #tpu.memory_space<vmem>>, %arg1: memref<17x256xf32, #tpu.memory_space<vmem>>, %arg2: memref<9x128xf32, #tpu.memory_space<vmem>>, %arg3: memref<136x8xf32, #tpu.memory_space<vmem>>, %arg4: memref<1x1024xf32, #tpu.memory_space<vmem>>, %arg5: memref<256x128xf32, #tpu.memory_space<vmem>>, %arg6: memref<128x64xf32, #tpu.memory_space<vmem>>, %arg7: memref<128x64xf32, #tpu.memory_space<vmem>>, %arg8: memref<8x8xf32, #tpu.memory_space<vmem>>, %arg9: memref<8x8xf32, #tpu.memory_space<vmem>>) attributes {dimension_semantics = [], scalar_prefetch = 0 : i64, scratch_operands = 0 : i64, tpu.core_type = #tpu.core_type<tc>} {
    %c0 = arith.constant 0 : index
    %c0_0 = arith.constant 0 : index
    %0 = vector.load %arg0[%c0, %c0_0] : memref<17x8xf32, #tpu.memory_space<vmem>>, vector<1x8xf32>
    %c1 = arith.constant 1 : index
    %c0_1 = arith.constant 0 : index
    %1 = vector.load %arg0[%c1, %c0_1] : memref<17x8xf32, #tpu.memory_space<vmem>>, vector<8x8xf32>
    %c9 = arith.constant 9 : index
    %c0_2 = arith.constant 0 : index
    %2 = vector.load %arg0[%c9, %c0_2] : memref<17x8xf32, #tpu.memory_space<vmem>>, vector<8x1xf32>
    %c0_3 = arith.constant 0 : index
    %c0_4 = arith.constant 0 : index
    %3 = vector.load %arg1[%c0_3, %c0_4] : memref<17x256xf32, #tpu.memory_space<vmem>>, vector<8x256xf32>
    %c8 = arith.constant 8 : index
    %c0_5 = arith.constant 0 : index
    %4 = vector.load %arg1[%c8, %c0_5] : memref<17x256xf32, #tpu.memory_space<vmem>>, vector<1x256xf32>
    %c9_6 = arith.constant 9 : index
    %c0_7 = arith.constant 0 : index
    %5 = vector.load %arg1[%c9_6, %c0_7] : memref<17x256xf32, #tpu.memory_space<vmem>>, vector<8x256xf32>
    %c0_8 = arith.constant 0 : index
    %c0_9 = arith.constant 0 : index
    %6 = vector.load %arg2[%c0_8, %c0_9] : memref<9x128xf32, #tpu.memory_space<vmem>>, vector<8x128xf32>
    %c8_10 = arith.constant 8 : index
    %c0_11 = arith.constant 0 : index
    %7 = vector.load %arg2[%c8_10, %c0_11] : memref<9x128xf32, #tpu.memory_space<vmem>>, vector<1x128xf32>
    %c0_12 = arith.constant 0 : index
    %c0_13 = arith.constant 0 : index
    %8 = vector.load %arg3[%c0_12, %c0_13] : memref<136x8xf32, #tpu.memory_space<vmem>>, vector<64x8xf32>
    %c64 = arith.constant 64 : index
    %c0_14 = arith.constant 0 : index
    %9 = vector.load %arg3[%c64, %c0_14] : memref<136x8xf32, #tpu.memory_space<vmem>>, vector<64x8xf32>
    %c128 = arith.constant 128 : index
    %c0_15 = arith.constant 0 : index
    %10 = vector.load %arg3[%c128, %c0_15] : memref<136x8xf32, #tpu.memory_space<vmem>>, vector<8x8xf32>
    %c0_16 = arith.constant 0 : index
    %c0_17 = arith.constant 0 : index
    %11 = vector.load %arg4[%c0_16, %c0_17] : memref<1x1024xf32, #tpu.memory_space<vmem>>, vector<1x256xf32>
    %c0_18 = arith.constant 0 : index
    %c256 = arith.constant 256 : index
    %12 = vector.load %arg4[%c0_18, %c256] : memref<1x1024xf32, #tpu.memory_space<vmem>>, vector<1x128xf32>
    %c0_19 = arith.constant 0 : index
    %c384 = arith.constant 384 : index
    %13 = vector.load %arg4[%c0_19, %c384] : memref<1x1024xf32, #tpu.memory_space<vmem>>, vector<1x64xf32>
    %c0_20 = arith.constant 0 : index
    %c512 = arith.constant 512 : index
    %14 = vector.load %arg4[%c0_20, %c512] : memref<1x1024xf32, #tpu.memory_space<vmem>>, vector<1x8xf32>
    %c0_21 = arith.constant 0 : index
    %c640 = arith.constant 640 : index
    %15 = vector.load %arg4[%c0_21, %c640] : memref<1x1024xf32, #tpu.memory_space<vmem>>, vector<1x128xf32>
    %c0_22 = arith.constant 0 : index
    %c768 = arith.constant 768 : index
    %16 = vector.load %arg4[%c0_22, %c768] : memref<1x1024xf32, #tpu.memory_space<vmem>>, vector<1x64xf32>
    %c0_23 = arith.constant 0 : index
    %c896 = arith.constant 896 : index
    %17 = vector.load %arg4[%c0_23, %c896] : memref<1x1024xf32, #tpu.memory_space<vmem>>, vector<1x8xf32>
    %cst = arith.constant dense<0.000000e+00> : vector<1x256xf32>
    %18 = tpu.matmul %0, %3, %cst {dimension_numbers = #tpu.dot_dimension_numbers<[1], [0], [0], [1], [0, 0, 1, 1], [], []>} : vector<1x8xf32>, vector<8x256xf32>, vector<1x256xf32> -> vector<1x256xf32>
    %19 = arith.addf %18, %11 : vector<1x256xf32>
    %20 = vector.broadcast %2 : vector<8x1xf32> to vector<8x256xf32>
    %21 = vector.broadcast %4 : vector<1x256xf32> to vector<8x256xf32>
    %22 = arith.mulf %20, %21 : vector<8x256xf32>
    %23 = vector.broadcast %19 : vector<1x256xf32> to vector<8x256xf32>
    %24 = arith.addf %23, %22 : vector<8x256xf32>
    %cst_24 = arith.constant dense<0.000000e+00> : vector<1x128xf32>
    %25 = tpu.matmul %0, %6, %cst_24 {dimension_numbers = #tpu.dot_dimension_numbers<[1], [0], [0], [1], [0, 0, 1, 1], [], []>} : vector<1x8xf32>, vector<8x128xf32>, vector<1x128xf32> -> vector<1x128xf32>
    %26 = arith.addf %25, %15 : vector<1x128xf32>
    %27 = vector.broadcast %2 : vector<8x1xf32> to vector<8x128xf32>
    %28 = vector.broadcast %7 : vector<1x128xf32> to vector<8x128xf32>
    %29 = arith.mulf %27, %28 : vector<8x128xf32>
    %30 = vector.broadcast %26 : vector<1x128xf32> to vector<8x128xf32>
    %31 = arith.addf %30, %29 : vector<8x128xf32>
    %cst_25 = arith.constant 0.000000e+00 : f32
    %32 = vector.broadcast %cst_25 : f32 to vector<8x128xf32>
    %33 = arith.maximumf %31, %32 : vector<8x128xf32>
    %c0_26 = arith.constant 0 : index
    %c0_27 = arith.constant 0 : index
    %34 = vector.load %arg7[%c0_26, %c0_27] : memref<128x64xf32, #tpu.memory_space<vmem>>, vector<128x64xf32>
    %cst_28 = arith.constant dense<0.000000e+00> : vector<8x64xf32>
    %35 = tpu.matmul %33, %34, %cst_28 {dimension_numbers = #tpu.dot_dimension_numbers<[1], [0], [0], [1], [0, 0, 1, 1], [], []>} : vector<8x128xf32>, vector<128x64xf32>, vector<8x64xf32> -> vector<8x64xf32>
    %36 = vector.broadcast %16 : vector<1x64xf32> to vector<8x64xf32>
    %37 = arith.addf %35, %36 : vector<8x64xf32>
    %cst_29 = arith.constant 0.000000e+00 : f32
    %38 = vector.broadcast %cst_29 : f32 to vector<8x64xf32>
    %39 = arith.maximumf %37, %38 : vector<8x64xf32>
    %cst_30 = arith.constant dense<0.000000e+00> : vector<8x8xf32>
    %40 = tpu.matmul %39, %9, %cst_30 {dimension_numbers = #tpu.dot_dimension_numbers<[1], [0], [0], [1], [0, 0, 1, 1], [], []>} : vector<8x64xf32>, vector<64x8xf32>, vector<8x8xf32> -> vector<8x8xf32>
    %41 = vector.broadcast %17 : vector<1x8xf32> to vector<8x8xf32>
    %42 = arith.addf %40, %41 : vector<8x8xf32>
    %43 = math.tanh %42 : vector<8x8xf32>
    %cst_31 = arith.constant 2.000000e-01 : f32
    %44 = vector.broadcast %cst_31 : f32 to vector<8x8xf32>
    %45 = arith.mulf %44, %43 : vector<8x8xf32>
    %46 = vector.broadcast %14 : vector<1x8xf32> to vector<8x8xf32>
    %47 = arith.addf %45, %46 : vector<8x8xf32>
    %cst_32 = arith.constant 1.000000e+00 : f32
    %48 = vector.broadcast %cst_32 : f32 to vector<8x8xf32>
    %49 = arith.subf %48, %10 : vector<8x8xf32>
    %cst_33 = arith.constant -1.000000e+03 : f32
    %50 = vector.broadcast %cst_33 : f32 to vector<8x8xf32>
    %51 = arith.mulf %50, %49 : vector<8x8xf32>
    %52 = vector.shape_cast %24 : vector<8x256xf32> to vector<8x1x256xf32>
    %53 = vector.shape_cast %5 : vector<8x256xf32> to vector<1x8x256xf32>
    %54 = vector.broadcast %52 : vector<8x1x256xf32> to vector<8x8x256xf32>
    %55 = vector.broadcast %53 : vector<1x8x256xf32> to vector<8x8x256xf32>
    %56 = arith.addf %54, %55 : vector<8x8x256xf32>
    %cst_34 = arith.constant 0.000000e+00 : f32
    %57 = vector.broadcast %cst_34 : f32 to vector<8x8x256xf32>
    %58 = arith.maximumf %56, %57 : vector<8x8x256xf32>
    %59 = vector.shape_cast %58 : vector<8x8x256xf32> to vector<64x256xf32>
    %c0_35 = arith.constant 0 : index
    %c0_36 = arith.constant 0 : index
    %60 = vector.load %arg5[%c0_35, %c0_36] : memref<256x128xf32, #tpu.memory_space<vmem>>, vector<256x128xf32>
    %cst_37 = arith.constant dense<0.000000e+00> : vector<64x128xf32>
    %61 = tpu.matmul %59, %60, %cst_37 {dimension_numbers = #tpu.dot_dimension_numbers<[1], [0], [0], [1], [0, 0, 1, 1], [], []>} : vector<64x256xf32>, vector<256x128xf32>, vector<64x128xf32> -> vector<64x128xf32>
    %62 = vector.broadcast %12 : vector<1x128xf32> to vector<64x128xf32>
    %63 = arith.addf %61, %62 : vector<64x128xf32>
    %cst_38 = arith.constant 0.000000e+00 : f32
    %64 = vector.broadcast %cst_38 : f32 to vector<64x128xf32>
    %65 = arith.maximumf %63, %64 : vector<64x128xf32>
    %c0_39 = arith.constant 0 : index
    %c0_40 = arith.constant 0 : index
    %66 = vector.load %arg6[%c0_39, %c0_40] : memref<128x64xf32, #tpu.memory_space<vmem>>, vector<128x64xf32>
    %cst_41 = arith.constant dense<0.000000e+00> : vector<64x64xf32>
    %67 = tpu.matmul %65, %66, %cst_41 {dimension_numbers = #tpu.dot_dimension_numbers<[1], [0], [0], [1], [0, 0, 1, 1], [], []>} : vector<64x128xf32>, vector<128x64xf32>, vector<64x64xf32> -> vector<64x64xf32>
    %68 = vector.broadcast %13 : vector<1x64xf32> to vector<64x64xf32>
    %69 = arith.addf %67, %68 : vector<64x64xf32>
    %cst_42 = arith.constant 0.000000e+00 : f32
    %70 = vector.broadcast %cst_42 : f32 to vector<64x64xf32>
    %71 = arith.maximumf %69, %70 : vector<64x64xf32>
    %cst_43 = arith.constant dense<0.000000e+00> : vector<64x8xf32>
    %72 = tpu.matmul %71, %8, %cst_43 {dimension_numbers = #tpu.dot_dimension_numbers<[1], [0], [0], [1], [0, 0, 1, 1], [], []>} : vector<64x64xf32>, vector<64x8xf32>, vector<64x8xf32> -> vector<64x8xf32>
    %73 = vector.shape_cast %47 : vector<8x8xf32> to vector<8x1x8xf32>
    %74 = vector.shape_cast %51 : vector<8x8xf32> to vector<1x8x8xf32>
    %75 = vector.broadcast %73 : vector<8x1x8xf32> to vector<8x8x8xf32>
    %76 = vector.broadcast %74 : vector<1x8x8xf32> to vector<8x8x8xf32>
    %77 = arith.addf %75, %76 : vector<8x8x8xf32>
    %78 = vector.shape_cast %77 : vector<8x8x8xf32> to vector<64x8xf32>
    %79 = arith.addf %47, %1 : vector<8x8xf32>
    %80 = vector.shape_cast %79 : vector<8x8xf32> to vector<8x1x8xf32>
    %81 = vector.shape_cast %51 : vector<8x8xf32> to vector<1x8x8xf32>
    %82 = vector.broadcast %80 : vector<8x1x8xf32> to vector<8x8x8xf32>
    %83 = vector.broadcast %81 : vector<1x8x8xf32> to vector<8x8x8xf32>
    %84 = arith.addf %82, %83 : vector<8x8x8xf32>
    %85 = vector.shape_cast %84 : vector<8x8x8xf32> to vector<64x8xf32>
    %86 = arith.addf %72, %78 : vector<64x8xf32>
    %87 = arith.addf %72, %85 : vector<64x8xf32>
    %88 = tpu.iota {dimensions = array<i32: 1>} : vector<1x8xi32>
    %89 = tpu.iota {dimensions = array<i32: 0>} : vector<8x1xi32>
    %90 = tpu.iota {dimensions = array<i32: 0>} : vector<8x1xi32>
    %cst_44 = arith.constant 0.000000e+00 : f32
    %91 = vector.broadcast %cst_44 : f32 to vector<8x8xf32>
    %cst_45 = arith.constant 0.000000e+00 : f32
    %92 = vector.broadcast %cst_45 : f32 to vector<8x8xf32>
    %c0_i32 = arith.constant 0 : i32
    %93 = vector.broadcast %c0_i32 : i32 to vector<1x1xi32>
    %94 = vector.extract_strided_slice %86 {offsets = [0, 0], sizes = [8, 8], strides = [1, 1]} : vector<64x8xf32> to vector<8x8xf32>
    %95 = vector.extract_strided_slice %87 {offsets = [0, 0], sizes = [8, 8], strides = [1, 1]} : vector<64x8xf32> to vector<8x8xf32>
    %96 = vector.broadcast %93 : vector<1x1xi32> to vector<8x1xi32>
    %97 = arith.cmpi eq, %89, %96 : vector<8x1xi32>
    %cst_46 = arith.constant 0.000000e+00 : f32
    %98 = vector.shape_cast %97 : vector<8x1xi1> to vector<8x1xi1>
    %99 = vector.broadcast %98 : vector<8x1xi1> to vector<8x8xi1>
    %100 = vector.broadcast %cst_46 : f32 to vector<8x8xf32>
    %101 = arith.select %99, %94, %100 : vector<8x8xi1>, vector<8x8xf32>
    %cst_47 = arith.constant dense<0.000000e+00> : vector<8xf32>
    %102 = vector.multi_reduction <add>, %101, %cst_47 [0] : vector<8x8xf32> to vector<8xf32>
    %103 = vector.shape_cast %102 : vector<8xf32> to vector<1x8xf32>
    %cst_48 = arith.constant 0.000000e+00 : f32
    %104 = vector.shape_cast %97 : vector<8x1xi1> to vector<8x1xi1>
    %105 = vector.broadcast %104 : vector<8x1xi1> to vector<8x8xi1>
    %106 = vector.broadcast %cst_48 : f32 to vector<8x8xf32>
    %107 = arith.select %105, %95, %106 : vector<8x8xi1>, vector<8x8xf32>
    %cst_49 = arith.constant dense<0.000000e+00> : vector<8xf32>
    %108 = vector.multi_reduction <add>, %107, %cst_49 [0] : vector<8x8xf32> to vector<8xf32>
    %109 = vector.shape_cast %108 : vector<8xf32> to vector<1x8xf32>
    %cst_50 = arith.constant dense<0xFF800000> : vector<1xf32>
    %110 = vector.multi_reduction <maximumf>, %109, %cst_50 [1] : vector<1x8xf32> to vector<1xf32>
    %111 = vector.shape_cast %110 : vector<1xf32> to vector<1x1xf32>
    %112 = vector.broadcast %111 : vector<1x1xf32> to vector<1x8xf32>
    %113 = arith.cmpf oge, %109, %112 : vector<1x8xf32>
    %c8_i32 = arith.constant 8 : i32
    %114 = vector.broadcast %c8_i32 : i32 to vector<1x8xi32>
    %115 = arith.select %113, %88, %114 : vector<1x8xi1>, vector<1x8xi32>
    %cst_51 = arith.constant dense<2147483647> : vector<1xi32>
    %116 = vector.multi_reduction <minsi>, %115, %cst_51 [1] : vector<1x8xi32> to vector<1xi32>
    %117 = vector.shape_cast %116 : vector<1xi32> to vector<1x1xi32>
    %118 = vector.broadcast %117 : vector<1x1xi32> to vector<1x8xi32>
    %119 = arith.cmpi eq, %88, %118 : vector<1x8xi32>
    %120 = arith.extui %119 : vector<1x8xi1> to vector<1x8xi32>
    %121 = arith.sitofp %120 : vector<1x8xi32> to vector<1x8xf32>
    %c0_i32_52 = arith.constant 0 : i32
    %122 = vector.broadcast %c0_i32_52 : i32 to vector<8x1xi32>
    %123 = arith.cmpi eq, %90, %122 : vector<8x1xi32>
    %124 = vector.shape_cast %123 : vector<8x1xi1> to vector<8x1xi1>
    %125 = vector.broadcast %124 : vector<8x1xi1> to vector<8x8xi1>
    %126 = vector.shape_cast %103 : vector<1x8xf32> to vector<1x8xf32>
    %127 = vector.broadcast %126 : vector<1x8xf32> to vector<8x8xf32>
    %128 = arith.select %125, %127, %91 : vector<8x8xi1>, vector<8x8xf32>
    %129 = vector.shape_cast %123 : vector<8x1xi1> to vector<8x1xi1>
    %130 = vector.broadcast %129 : vector<8x1xi1> to vector<8x8xi1>
    %131 = vector.shape_cast %121 : vector<1x8xf32> to vector<1x8xf32>
    %132 = vector.broadcast %131 : vector<1x8xf32> to vector<8x8xf32>
    %133 = arith.select %130, %132, %92 : vector<8x8xi1>, vector<8x8xf32>
    %134 = vector.extract_strided_slice %86 {offsets = [8, 0], sizes = [8, 8], strides = [1, 1]} : vector<64x8xf32> to vector<8x8xf32>
    %135 = vector.extract_strided_slice %87 {offsets = [8, 0], sizes = [8, 8], strides = [1, 1]} : vector<64x8xf32> to vector<8x8xf32>
    %136 = vector.broadcast %117 : vector<1x1xi32> to vector<8x1xi32>
    %137 = arith.cmpi eq, %89, %136 : vector<8x1xi32>
    %cst_53 = arith.constant 0.000000e+00 : f32
    %138 = vector.shape_cast %137 : vector<8x1xi1> to vector<8x1xi1>
    %139 = vector.broadcast %138 : vector<8x1xi1> to vector<8x8xi1>
    %140 = vector.broadcast %cst_53 : f32 to vector<8x8xf32>
    %141 = arith.select %139, %134, %140 : vector<8x8xi1>, vector<8x8xf32>
    %cst_54 = arith.constant dense<0.000000e+00> : vector<8xf32>
    %142 = vector.multi_reduction <add>, %141, %cst_54 [0] : vector<8x8xf32> to vector<8xf32>
    %143 = vector.shape_cast %142 : vector<8xf32> to vector<1x8xf32>
    %cst_55 = arith.constant 0.000000e+00 : f32
    %144 = vector.shape_cast %137 : vector<8x1xi1> to vector<8x1xi1>
    %145 = vector.broadcast %144 : vector<8x1xi1> to vector<8x8xi1>
    %146 = vector.broadcast %cst_55 : f32 to vector<8x8xf32>
    %147 = arith.select %145, %135, %146 : vector<8x8xi1>, vector<8x8xf32>
    %cst_56 = arith.constant dense<0.000000e+00> : vector<8xf32>
    %148 = vector.multi_reduction <add>, %147, %cst_56 [0] : vector<8x8xf32> to vector<8xf32>
    %149 = vector.shape_cast %148 : vector<8xf32> to vector<1x8xf32>
    %cst_57 = arith.constant dense<0xFF800000> : vector<1xf32>
    %150 = vector.multi_reduction <maximumf>, %149, %cst_57 [1] : vector<1x8xf32> to vector<1xf32>
    %151 = vector.shape_cast %150 : vector<1xf32> to vector<1x1xf32>
    %152 = vector.broadcast %151 : vector<1x1xf32> to vector<1x8xf32>
    %153 = arith.cmpf oge, %149, %152 : vector<1x8xf32>
    %c8_i32_58 = arith.constant 8 : i32
    %154 = vector.broadcast %c8_i32_58 : i32 to vector<1x8xi32>
    %155 = arith.select %153, %88, %154 : vector<1x8xi1>, vector<1x8xi32>
    %cst_59 = arith.constant dense<2147483647> : vector<1xi32>
    %156 = vector.multi_reduction <minsi>, %155, %cst_59 [1] : vector<1x8xi32> to vector<1xi32>
    %157 = vector.shape_cast %156 : vector<1xi32> to vector<1x1xi32>
    %158 = vector.broadcast %157 : vector<1x1xi32> to vector<1x8xi32>
    %159 = arith.cmpi eq, %88, %158 : vector<1x8xi32>
    %160 = arith.extui %159 : vector<1x8xi1> to vector<1x8xi32>
    %161 = arith.sitofp %160 : vector<1x8xi32> to vector<1x8xf32>
    %c1_i32 = arith.constant 1 : i32
    %162 = vector.broadcast %c1_i32 : i32 to vector<8x1xi32>
    %163 = arith.cmpi eq, %90, %162 : vector<8x1xi32>
    %164 = vector.shape_cast %163 : vector<8x1xi1> to vector<8x1xi1>
    %165 = vector.broadcast %164 : vector<8x1xi1> to vector<8x8xi1>
    %166 = vector.shape_cast %143 : vector<1x8xf32> to vector<1x8xf32>
    %167 = vector.broadcast %166 : vector<1x8xf32> to vector<8x8xf32>
    %168 = arith.select %165, %167, %128 : vector<8x8xi1>, vector<8x8xf32>
    %169 = vector.shape_cast %163 : vector<8x1xi1> to vector<8x1xi1>
    %170 = vector.broadcast %169 : vector<8x1xi1> to vector<8x8xi1>
    %171 = vector.shape_cast %161 : vector<1x8xf32> to vector<1x8xf32>
    %172 = vector.broadcast %171 : vector<1x8xf32> to vector<8x8xf32>
    %173 = arith.select %170, %172, %133 : vector<8x8xi1>, vector<8x8xf32>
    %174 = vector.extract_strided_slice %86 {offsets = [16, 0], sizes = [8, 8], strides = [1, 1]} : vector<64x8xf32> to vector<8x8xf32>
    %175 = vector.extract_strided_slice %87 {offsets = [16, 0], sizes = [8, 8], strides = [1, 1]} : vector<64x8xf32> to vector<8x8xf32>
    %176 = vector.broadcast %157 : vector<1x1xi32> to vector<8x1xi32>
    %177 = arith.cmpi eq, %89, %176 : vector<8x1xi32>
    %cst_60 = arith.constant 0.000000e+00 : f32
    %178 = vector.shape_cast %177 : vector<8x1xi1> to vector<8x1xi1>
    %179 = vector.broadcast %178 : vector<8x1xi1> to vector<8x8xi1>
    %180 = vector.broadcast %cst_60 : f32 to vector<8x8xf32>
    %181 = arith.select %179, %174, %180 : vector<8x8xi1>, vector<8x8xf32>
    %cst_61 = arith.constant dense<0.000000e+00> : vector<8xf32>
    %182 = vector.multi_reduction <add>, %181, %cst_61 [0] : vector<8x8xf32> to vector<8xf32>
    %183 = vector.shape_cast %182 : vector<8xf32> to vector<1x8xf32>
    %cst_62 = arith.constant 0.000000e+00 : f32
    %184 = vector.shape_cast %177 : vector<8x1xi1> to vector<8x1xi1>
    %185 = vector.broadcast %184 : vector<8x1xi1> to vector<8x8xi1>
    %186 = vector.broadcast %cst_62 : f32 to vector<8x8xf32>
    %187 = arith.select %185, %175, %186 : vector<8x8xi1>, vector<8x8xf32>
    %cst_63 = arith.constant dense<0.000000e+00> : vector<8xf32>
    %188 = vector.multi_reduction <add>, %187, %cst_63 [0] : vector<8x8xf32> to vector<8xf32>
    %189 = vector.shape_cast %188 : vector<8xf32> to vector<1x8xf32>
    %cst_64 = arith.constant dense<0xFF800000> : vector<1xf32>
    %190 = vector.multi_reduction <maximumf>, %189, %cst_64 [1] : vector<1x8xf32> to vector<1xf32>
    %191 = vector.shape_cast %190 : vector<1xf32> to vector<1x1xf32>
    %192 = vector.broadcast %191 : vector<1x1xf32> to vector<1x8xf32>
    %193 = arith.cmpf oge, %189, %192 : vector<1x8xf32>
    %c8_i32_65 = arith.constant 8 : i32
    %194 = vector.broadcast %c8_i32_65 : i32 to vector<1x8xi32>
    %195 = arith.select %193, %88, %194 : vector<1x8xi1>, vector<1x8xi32>
    %cst_66 = arith.constant dense<2147483647> : vector<1xi32>
    %196 = vector.multi_reduction <minsi>, %195, %cst_66 [1] : vector<1x8xi32> to vector<1xi32>
    %197 = vector.shape_cast %196 : vector<1xi32> to vector<1x1xi32>
    %198 = vector.broadcast %197 : vector<1x1xi32> to vector<1x8xi32>
    %199 = arith.cmpi eq, %88, %198 : vector<1x8xi32>
    %200 = arith.extui %199 : vector<1x8xi1> to vector<1x8xi32>
    %201 = arith.sitofp %200 : vector<1x8xi32> to vector<1x8xf32>
    %c2_i32 = arith.constant 2 : i32
    %202 = vector.broadcast %c2_i32 : i32 to vector<8x1xi32>
    %203 = arith.cmpi eq, %90, %202 : vector<8x1xi32>
    %204 = vector.shape_cast %203 : vector<8x1xi1> to vector<8x1xi1>
    %205 = vector.broadcast %204 : vector<8x1xi1> to vector<8x8xi1>
    %206 = vector.shape_cast %183 : vector<1x8xf32> to vector<1x8xf32>
    %207 = vector.broadcast %206 : vector<1x8xf32> to vector<8x8xf32>
    %208 = arith.select %205, %207, %168 : vector<8x8xi1>, vector<8x8xf32>
    %209 = vector.shape_cast %203 : vector<8x1xi1> to vector<8x1xi1>
    %210 = vector.broadcast %209 : vector<8x1xi1> to vector<8x8xi1>
    %211 = vector.shape_cast %201 : vector<1x8xf32> to vector<1x8xf32>
    %212 = vector.broadcast %211 : vector<1x8xf32> to vector<8x8xf32>
    %213 = arith.select %210, %212, %173 : vector<8x8xi1>, vector<8x8xf32>
    %214 = vector.extract_strided_slice %86 {offsets = [24, 0], sizes = [8, 8], strides = [1, 1]} : vector<64x8xf32> to vector<8x8xf32>
    %215 = vector.extract_strided_slice %87 {offsets = [24, 0], sizes = [8, 8], strides = [1, 1]} : vector<64x8xf32> to vector<8x8xf32>
    %216 = vector.broadcast %197 : vector<1x1xi32> to vector<8x1xi32>
    %217 = arith.cmpi eq, %89, %216 : vector<8x1xi32>
    %cst_67 = arith.constant 0.000000e+00 : f32
    %218 = vector.shape_cast %217 : vector<8x1xi1> to vector<8x1xi1>
    %219 = vector.broadcast %218 : vector<8x1xi1> to vector<8x8xi1>
    %220 = vector.broadcast %cst_67 : f32 to vector<8x8xf32>
    %221 = arith.select %219, %214, %220 : vector<8x8xi1>, vector<8x8xf32>
    %cst_68 = arith.constant dense<0.000000e+00> : vector<8xf32>
    %222 = vector.multi_reduction <add>, %221, %cst_68 [0] : vector<8x8xf32> to vector<8xf32>
    %223 = vector.shape_cast %222 : vector<8xf32> to vector<1x8xf32>
    %cst_69 = arith.constant 0.000000e+00 : f32
    %224 = vector.shape_cast %217 : vector<8x1xi1> to vector<8x1xi1>
    %225 = vector.broadcast %224 : vector<8x1xi1> to vector<8x8xi1>
    %226 = vector.broadcast %cst_69 : f32 to vector<8x8xf32>
    %227 = arith.select %225, %215, %226 : vector<8x8xi1>, vector<8x8xf32>
    %cst_70 = arith.constant dense<0.000000e+00> : vector<8xf32>
    %228 = vector.multi_reduction <add>, %227, %cst_70 [0] : vector<8x8xf32> to vector<8xf32>
    %229 = vector.shape_cast %228 : vector<8xf32> to vector<1x8xf32>
    %cst_71 = arith.constant dense<0xFF800000> : vector<1xf32>
    %230 = vector.multi_reduction <maximumf>, %229, %cst_71 [1] : vector<1x8xf32> to vector<1xf32>
    %231 = vector.shape_cast %230 : vector<1xf32> to vector<1x1xf32>
    %232 = vector.broadcast %231 : vector<1x1xf32> to vector<1x8xf32>
    %233 = arith.cmpf oge, %229, %232 : vector<1x8xf32>
    %c8_i32_72 = arith.constant 8 : i32
    %234 = vector.broadcast %c8_i32_72 : i32 to vector<1x8xi32>
    %235 = arith.select %233, %88, %234 : vector<1x8xi1>, vector<1x8xi32>
    %cst_73 = arith.constant dense<2147483647> : vector<1xi32>
    %236 = vector.multi_reduction <minsi>, %235, %cst_73 [1] : vector<1x8xi32> to vector<1xi32>
    %237 = vector.shape_cast %236 : vector<1xi32> to vector<1x1xi32>
    %238 = vector.broadcast %237 : vector<1x1xi32> to vector<1x8xi32>
    %239 = arith.cmpi eq, %88, %238 : vector<1x8xi32>
    %240 = arith.extui %239 : vector<1x8xi1> to vector<1x8xi32>
    %241 = arith.sitofp %240 : vector<1x8xi32> to vector<1x8xf32>
    %c3_i32 = arith.constant 3 : i32
    %242 = vector.broadcast %c3_i32 : i32 to vector<8x1xi32>
    %243 = arith.cmpi eq, %90, %242 : vector<8x1xi32>
    %244 = vector.shape_cast %243 : vector<8x1xi1> to vector<8x1xi1>
    %245 = vector.broadcast %244 : vector<8x1xi1> to vector<8x8xi1>
    %246 = vector.shape_cast %223 : vector<1x8xf32> to vector<1x8xf32>
    %247 = vector.broadcast %246 : vector<1x8xf32> to vector<8x8xf32>
    %248 = arith.select %245, %247, %208 : vector<8x8xi1>, vector<8x8xf32>
    %249 = vector.shape_cast %243 : vector<8x1xi1> to vector<8x1xi1>
    %250 = vector.broadcast %249 : vector<8x1xi1> to vector<8x8xi1>
    %251 = vector.shape_cast %241 : vector<1x8xf32> to vector<1x8xf32>
    %252 = vector.broadcast %251 : vector<1x8xf32> to vector<8x8xf32>
    %253 = arith.select %250, %252, %213 : vector<8x8xi1>, vector<8x8xf32>
    %254 = vector.extract_strided_slice %86 {offsets = [32, 0], sizes = [8, 8], strides = [1, 1]} : vector<64x8xf32> to vector<8x8xf32>
    %255 = vector.extract_strided_slice %87 {offsets = [32, 0], sizes = [8, 8], strides = [1, 1]} : vector<64x8xf32> to vector<8x8xf32>
    %256 = vector.broadcast %237 : vector<1x1xi32> to vector<8x1xi32>
    %257 = arith.cmpi eq, %89, %256 : vector<8x1xi32>
    %cst_74 = arith.constant 0.000000e+00 : f32
    %258 = vector.shape_cast %257 : vector<8x1xi1> to vector<8x1xi1>
    %259 = vector.broadcast %258 : vector<8x1xi1> to vector<8x8xi1>
    %260 = vector.broadcast %cst_74 : f32 to vector<8x8xf32>
    %261 = arith.select %259, %254, %260 : vector<8x8xi1>, vector<8x8xf32>
    %cst_75 = arith.constant dense<0.000000e+00> : vector<8xf32>
    %262 = vector.multi_reduction <add>, %261, %cst_75 [0] : vector<8x8xf32> to vector<8xf32>
    %263 = vector.shape_cast %262 : vector<8xf32> to vector<1x8xf32>
    %cst_76 = arith.constant 0.000000e+00 : f32
    %264 = vector.shape_cast %257 : vector<8x1xi1> to vector<8x1xi1>
    %265 = vector.broadcast %264 : vector<8x1xi1> to vector<8x8xi1>
    %266 = vector.broadcast %cst_76 : f32 to vector<8x8xf32>
    %267 = arith.select %265, %255, %266 : vector<8x8xi1>, vector<8x8xf32>
    %cst_77 = arith.constant dense<0.000000e+00> : vector<8xf32>
    %268 = vector.multi_reduction <add>, %267, %cst_77 [0] : vector<8x8xf32> to vector<8xf32>
    %269 = vector.shape_cast %268 : vector<8xf32> to vector<1x8xf32>
    %cst_78 = arith.constant dense<0xFF800000> : vector<1xf32>
    %270 = vector.multi_reduction <maximumf>, %269, %cst_78 [1] : vector<1x8xf32> to vector<1xf32>
    %271 = vector.shape_cast %270 : vector<1xf32> to vector<1x1xf32>
    %272 = vector.broadcast %271 : vector<1x1xf32> to vector<1x8xf32>
    %273 = arith.cmpf oge, %269, %272 : vector<1x8xf32>
    %c8_i32_79 = arith.constant 8 : i32
    %274 = vector.broadcast %c8_i32_79 : i32 to vector<1x8xi32>
    %275 = arith.select %273, %88, %274 : vector<1x8xi1>, vector<1x8xi32>
    %cst_80 = arith.constant dense<2147483647> : vector<1xi32>
    %276 = vector.multi_reduction <minsi>, %275, %cst_80 [1] : vector<1x8xi32> to vector<1xi32>
    %277 = vector.shape_cast %276 : vector<1xi32> to vector<1x1xi32>
    %278 = vector.broadcast %277 : vector<1x1xi32> to vector<1x8xi32>
    %279 = arith.cmpi eq, %88, %278 : vector<1x8xi32>
    %280 = arith.extui %279 : vector<1x8xi1> to vector<1x8xi32>
    %281 = arith.sitofp %280 : vector<1x8xi32> to vector<1x8xf32>
    %c4_i32 = arith.constant 4 : i32
    %282 = vector.broadcast %c4_i32 : i32 to vector<8x1xi32>
    %283 = arith.cmpi eq, %90, %282 : vector<8x1xi32>
    %284 = vector.shape_cast %283 : vector<8x1xi1> to vector<8x1xi1>
    %285 = vector.broadcast %284 : vector<8x1xi1> to vector<8x8xi1>
    %286 = vector.shape_cast %263 : vector<1x8xf32> to vector<1x8xf32>
    %287 = vector.broadcast %286 : vector<1x8xf32> to vector<8x8xf32>
    %288 = arith.select %285, %287, %248 : vector<8x8xi1>, vector<8x8xf32>
    %289 = vector.shape_cast %283 : vector<8x1xi1> to vector<8x1xi1>
    %290 = vector.broadcast %289 : vector<8x1xi1> to vector<8x8xi1>
    %291 = vector.shape_cast %281 : vector<1x8xf32> to vector<1x8xf32>
    %292 = vector.broadcast %291 : vector<1x8xf32> to vector<8x8xf32>
    %293 = arith.select %290, %292, %253 : vector<8x8xi1>, vector<8x8xf32>
    %294 = vector.extract_strided_slice %86 {offsets = [40, 0], sizes = [8, 8], strides = [1, 1]} : vector<64x8xf32> to vector<8x8xf32>
    %295 = vector.extract_strided_slice %87 {offsets = [40, 0], sizes = [8, 8], strides = [1, 1]} : vector<64x8xf32> to vector<8x8xf32>
    %296 = vector.broadcast %277 : vector<1x1xi32> to vector<8x1xi32>
    %297 = arith.cmpi eq, %89, %296 : vector<8x1xi32>
    %cst_81 = arith.constant 0.000000e+00 : f32
    %298 = vector.shape_cast %297 : vector<8x1xi1> to vector<8x1xi1>
    %299 = vector.broadcast %298 : vector<8x1xi1> to vector<8x8xi1>
    %300 = vector.broadcast %cst_81 : f32 to vector<8x8xf32>
    %301 = arith.select %299, %294, %300 : vector<8x8xi1>, vector<8x8xf32>
    %cst_82 = arith.constant dense<0.000000e+00> : vector<8xf32>
    %302 = vector.multi_reduction <add>, %301, %cst_82 [0] : vector<8x8xf32> to vector<8xf32>
    %303 = vector.shape_cast %302 : vector<8xf32> to vector<1x8xf32>
    %cst_83 = arith.constant 0.000000e+00 : f32
    %304 = vector.shape_cast %297 : vector<8x1xi1> to vector<8x1xi1>
    %305 = vector.broadcast %304 : vector<8x1xi1> to vector<8x8xi1>
    %306 = vector.broadcast %cst_83 : f32 to vector<8x8xf32>
    %307 = arith.select %305, %295, %306 : vector<8x8xi1>, vector<8x8xf32>
    %cst_84 = arith.constant dense<0.000000e+00> : vector<8xf32>
    %308 = vector.multi_reduction <add>, %307, %cst_84 [0] : vector<8x8xf32> to vector<8xf32>
    %309 = vector.shape_cast %308 : vector<8xf32> to vector<1x8xf32>
    %cst_85 = arith.constant dense<0xFF800000> : vector<1xf32>
    %310 = vector.multi_reduction <maximumf>, %309, %cst_85 [1] : vector<1x8xf32> to vector<1xf32>
    %311 = vector.shape_cast %310 : vector<1xf32> to vector<1x1xf32>
    %312 = vector.broadcast %311 : vector<1x1xf32> to vector<1x8xf32>
    %313 = arith.cmpf oge, %309, %312 : vector<1x8xf32>
    %c8_i32_86 = arith.constant 8 : i32
    %314 = vector.broadcast %c8_i32_86 : i32 to vector<1x8xi32>
    %315 = arith.select %313, %88, %314 : vector<1x8xi1>, vector<1x8xi32>
    %cst_87 = arith.constant dense<2147483647> : vector<1xi32>
    %316 = vector.multi_reduction <minsi>, %315, %cst_87 [1] : vector<1x8xi32> to vector<1xi32>
    %317 = vector.shape_cast %316 : vector<1xi32> to vector<1x1xi32>
    %318 = vector.broadcast %317 : vector<1x1xi32> to vector<1x8xi32>
    %319 = arith.cmpi eq, %88, %318 : vector<1x8xi32>
    %320 = arith.extui %319 : vector<1x8xi1> to vector<1x8xi32>
    %321 = arith.sitofp %320 : vector<1x8xi32> to vector<1x8xf32>
    %c5_i32 = arith.constant 5 : i32
    %322 = vector.broadcast %c5_i32 : i32 to vector<8x1xi32>
    %323 = arith.cmpi eq, %90, %322 : vector<8x1xi32>
    %324 = vector.shape_cast %323 : vector<8x1xi1> to vector<8x1xi1>
    %325 = vector.broadcast %324 : vector<8x1xi1> to vector<8x8xi1>
    %326 = vector.shape_cast %303 : vector<1x8xf32> to vector<1x8xf32>
    %327 = vector.broadcast %326 : vector<1x8xf32> to vector<8x8xf32>
    %328 = arith.select %325, %327, %288 : vector<8x8xi1>, vector<8x8xf32>
    %329 = vector.shape_cast %323 : vector<8x1xi1> to vector<8x1xi1>
    %330 = vector.broadcast %329 : vector<8x1xi1> to vector<8x8xi1>
    %331 = vector.shape_cast %321 : vector<1x8xf32> to vector<1x8xf32>
    %332 = vector.broadcast %331 : vector<1x8xf32> to vector<8x8xf32>
    %333 = arith.select %330, %332, %293 : vector<8x8xi1>, vector<8x8xf32>
    %334 = vector.extract_strided_slice %86 {offsets = [48, 0], sizes = [8, 8], strides = [1, 1]} : vector<64x8xf32> to vector<8x8xf32>
    %335 = vector.extract_strided_slice %87 {offsets = [48, 0], sizes = [8, 8], strides = [1, 1]} : vector<64x8xf32> to vector<8x8xf32>
    %336 = vector.broadcast %317 : vector<1x1xi32> to vector<8x1xi32>
    %337 = arith.cmpi eq, %89, %336 : vector<8x1xi32>
    %cst_88 = arith.constant 0.000000e+00 : f32
    %338 = vector.shape_cast %337 : vector<8x1xi1> to vector<8x1xi1>
    %339 = vector.broadcast %338 : vector<8x1xi1> to vector<8x8xi1>
    %340 = vector.broadcast %cst_88 : f32 to vector<8x8xf32>
    %341 = arith.select %339, %334, %340 : vector<8x8xi1>, vector<8x8xf32>
    %cst_89 = arith.constant dense<0.000000e+00> : vector<8xf32>
    %342 = vector.multi_reduction <add>, %341, %cst_89 [0] : vector<8x8xf32> to vector<8xf32>
    %343 = vector.shape_cast %342 : vector<8xf32> to vector<1x8xf32>
    %cst_90 = arith.constant 0.000000e+00 : f32
    %344 = vector.shape_cast %337 : vector<8x1xi1> to vector<8x1xi1>
    %345 = vector.broadcast %344 : vector<8x1xi1> to vector<8x8xi1>
    %346 = vector.broadcast %cst_90 : f32 to vector<8x8xf32>
    %347 = arith.select %345, %335, %346 : vector<8x8xi1>, vector<8x8xf32>
    %cst_91 = arith.constant dense<0.000000e+00> : vector<8xf32>
    %348 = vector.multi_reduction <add>, %347, %cst_91 [0] : vector<8x8xf32> to vector<8xf32>
    %349 = vector.shape_cast %348 : vector<8xf32> to vector<1x8xf32>
    %cst_92 = arith.constant dense<0xFF800000> : vector<1xf32>
    %350 = vector.multi_reduction <maximumf>, %349, %cst_92 [1] : vector<1x8xf32> to vector<1xf32>
    %351 = vector.shape_cast %350 : vector<1xf32> to vector<1x1xf32>
    %352 = vector.broadcast %351 : vector<1x1xf32> to vector<1x8xf32>
    %353 = arith.cmpf oge, %349, %352 : vector<1x8xf32>
    %c8_i32_93 = arith.constant 8 : i32
    %354 = vector.broadcast %c8_i32_93 : i32 to vector<1x8xi32>
    %355 = arith.select %353, %88, %354 : vector<1x8xi1>, vector<1x8xi32>
    %cst_94 = arith.constant dense<2147483647> : vector<1xi32>
    %356 = vector.multi_reduction <minsi>, %355, %cst_94 [1] : vector<1x8xi32> to vector<1xi32>
    %357 = vector.shape_cast %356 : vector<1xi32> to vector<1x1xi32>
    %358 = vector.broadcast %357 : vector<1x1xi32> to vector<1x8xi32>
    %359 = arith.cmpi eq, %88, %358 : vector<1x8xi32>
    %360 = arith.extui %359 : vector<1x8xi1> to vector<1x8xi32>
    %361 = arith.sitofp %360 : vector<1x8xi32> to vector<1x8xf32>
    %c6_i32 = arith.constant 6 : i32
    %362 = vector.broadcast %c6_i32 : i32 to vector<8x1xi32>
    %363 = arith.cmpi eq, %90, %362 : vector<8x1xi32>
    %364 = vector.shape_cast %363 : vector<8x1xi1> to vector<8x1xi1>
    %365 = vector.broadcast %364 : vector<8x1xi1> to vector<8x8xi1>
    %366 = vector.shape_cast %343 : vector<1x8xf32> to vector<1x8xf32>
    %367 = vector.broadcast %366 : vector<1x8xf32> to vector<8x8xf32>
    %368 = arith.select %365, %367, %328 : vector<8x8xi1>, vector<8x8xf32>
    %369 = vector.shape_cast %363 : vector<8x1xi1> to vector<8x1xi1>
    %370 = vector.broadcast %369 : vector<8x1xi1> to vector<8x8xi1>
    %371 = vector.shape_cast %361 : vector<1x8xf32> to vector<1x8xf32>
    %372 = vector.broadcast %371 : vector<1x8xf32> to vector<8x8xf32>
    %373 = arith.select %370, %372, %333 : vector<8x8xi1>, vector<8x8xf32>
    %374 = vector.extract_strided_slice %86 {offsets = [56, 0], sizes = [8, 8], strides = [1, 1]} : vector<64x8xf32> to vector<8x8xf32>
    %375 = vector.extract_strided_slice %87 {offsets = [56, 0], sizes = [8, 8], strides = [1, 1]} : vector<64x8xf32> to vector<8x8xf32>
    %376 = vector.broadcast %357 : vector<1x1xi32> to vector<8x1xi32>
    %377 = arith.cmpi eq, %89, %376 : vector<8x1xi32>
    %cst_95 = arith.constant 0.000000e+00 : f32
    %378 = vector.shape_cast %377 : vector<8x1xi1> to vector<8x1xi1>
    %379 = vector.broadcast %378 : vector<8x1xi1> to vector<8x8xi1>
    %380 = vector.broadcast %cst_95 : f32 to vector<8x8xf32>
    %381 = arith.select %379, %374, %380 : vector<8x8xi1>, vector<8x8xf32>
    %cst_96 = arith.constant dense<0.000000e+00> : vector<8xf32>
    %382 = vector.multi_reduction <add>, %381, %cst_96 [0] : vector<8x8xf32> to vector<8xf32>
    %383 = vector.shape_cast %382 : vector<8xf32> to vector<1x8xf32>
    %cst_97 = arith.constant 0.000000e+00 : f32
    %384 = vector.shape_cast %377 : vector<8x1xi1> to vector<8x1xi1>
    %385 = vector.broadcast %384 : vector<8x1xi1> to vector<8x8xi1>
    %386 = vector.broadcast %cst_97 : f32 to vector<8x8xf32>
    %387 = arith.select %385, %375, %386 : vector<8x8xi1>, vector<8x8xf32>
    %cst_98 = arith.constant dense<0.000000e+00> : vector<8xf32>
    %388 = vector.multi_reduction <add>, %387, %cst_98 [0] : vector<8x8xf32> to vector<8xf32>
    %389 = vector.shape_cast %388 : vector<8xf32> to vector<1x8xf32>
    %cst_99 = arith.constant dense<0xFF800000> : vector<1xf32>
    %390 = vector.multi_reduction <maximumf>, %389, %cst_99 [1] : vector<1x8xf32> to vector<1xf32>
    %391 = vector.shape_cast %390 : vector<1xf32> to vector<1x1xf32>
    %392 = vector.broadcast %391 : vector<1x1xf32> to vector<1x8xf32>
    %393 = arith.cmpf oge, %389, %392 : vector<1x8xf32>
    %c8_i32_100 = arith.constant 8 : i32
    %394 = vector.broadcast %c8_i32_100 : i32 to vector<1x8xi32>
    %395 = arith.select %393, %88, %394 : vector<1x8xi1>, vector<1x8xi32>
    %cst_101 = arith.constant dense<2147483647> : vector<1xi32>
    %396 = vector.multi_reduction <minsi>, %395, %cst_101 [1] : vector<1x8xi32> to vector<1xi32>
    %397 = vector.shape_cast %396 : vector<1xi32> to vector<1x1xi32>
    %398 = vector.broadcast %397 : vector<1x1xi32> to vector<1x8xi32>
    %399 = arith.cmpi eq, %88, %398 : vector<1x8xi32>
    %400 = arith.extui %399 : vector<1x8xi1> to vector<1x8xi32>
    %401 = arith.sitofp %400 : vector<1x8xi32> to vector<1x8xf32>
    %c7_i32 = arith.constant 7 : i32
    %402 = vector.broadcast %c7_i32 : i32 to vector<8x1xi32>
    %403 = arith.cmpi eq, %90, %402 : vector<8x1xi32>
    %404 = vector.shape_cast %403 : vector<8x1xi1> to vector<8x1xi1>
    %405 = vector.broadcast %404 : vector<8x1xi1> to vector<8x8xi1>
    %406 = vector.shape_cast %383 : vector<1x8xf32> to vector<1x8xf32>
    %407 = vector.broadcast %406 : vector<1x8xf32> to vector<8x8xf32>
    %408 = arith.select %405, %407, %368 : vector<8x8xi1>, vector<8x8xf32>
    %409 = vector.shape_cast %403 : vector<8x1xi1> to vector<8x1xi1>
    %410 = vector.broadcast %409 : vector<8x1xi1> to vector<8x8xi1>
    %411 = vector.shape_cast %401 : vector<1x8xf32> to vector<1x8xf32>
    %412 = vector.broadcast %411 : vector<1x8xf32> to vector<8x8xf32>
    %413 = arith.select %410, %412, %373 : vector<8x8xi1>, vector<8x8xf32>
    %c0_102 = arith.constant 0 : index
    %c0_103 = arith.constant 0 : index
    %414 = vector.load %arg8[%c0_102, %c0_103] : memref<8x8xf32, #tpu.memory_space<vmem>>, vector<8x8xf32>
    tpu.vector_store %arg8[%c0_102, %c0_103], %408 {strides = array<i32>} : memref<8x8xf32, #tpu.memory_space<vmem>>, vector<8x8xf32>,
    %c0_104 = arith.constant 0 : index
    %c0_105 = arith.constant 0 : index
    %415 = vector.load %arg9[%c0_104, %c0_105] : memref<8x8xf32, #tpu.memory_space<vmem>>, vector<8x8xf32>
    tpu.vector_store %arg9[%c0_104, %c0_105], %413 {strides = array<i32>} : memref<8x8xf32, #tpu.memory_space<vmem>>, vector<8x8xf32>,
    return
  }
}

</mosaic_0001>

<llo_original>
// kernel: tpu_custom_call.1
$region0: #{tpu_custom_call.1}
  #allocation0 [shape = 'u32[]', space=smem, size = 0x4, offset = 0x4, fixed_abs, tag = 'smem constant byte address 0x4 - core index']
  #allocation1 [shape = 'u32[144,128]{1,0:T(1,128)}', space=vmem, size = 0x12000, scoped, tag = 'internal scratch']
  %s0 = inlined_call_operand.vmem [shape: f32[17,8], index: 0, kind: input, shape index: {}]
  %s1 = inlined_call_operand.vmem [shape: f32[17,256], index: 1, kind: input, shape index: {}]
  %s2 = inlined_call_operand.vmem [shape: f32[9,128], index: 2, kind: input, shape index: {}]
  %s3 = inlined_call_operand.vmem [shape: f32[136,8], index: 3, kind: input, shape index: {}]
  %s4 = inlined_call_operand.vmem [shape: f32[1,1024], index: 4, kind: input, shape index: {}]
  %s5 = inlined_call_operand.vmem [shape: f32[256,128], index: 5, kind: input, shape index: {}]
  %s6 = inlined_call_operand.vmem [shape: f32[128,64], index: 6, kind: input, shape index: {}]
  %s7 = inlined_call_operand.vmem [shape: f32[128,64], index: 7, kind: input, shape index: {}]
  %s8 = inlined_call_operand.hbm [shape: f32[8,8], index: 8, kind: output, shape index: {0}]
  %s9 = inlined_call_operand.hbm [shape: f32[8,8], index: 9, kind: output, shape index: {1}]
  %10 = xla_tuple %s8, %s9
  %s11 = sld [smem:[#allocation0]]
  $region50: #{tpu_custom_call.1} parent=0
    _
  %s13 = ssub.s32 1, %s11
  %s14 = scalar_select 0, %s13, %s11
  $region1: #{tpu_custom_call.1} parent=0
    #allocation2 [shape = 'u8[4096]{0}', space=vmem, size = 0x1000, scoped, tag = 'output window, operand 0, single buffered']
    #allocation3 [shape = 's32[1]{0}', space=sflag, size = 0x4, scoped, tag = 'scoped memory for tpu_custom_call.1']
    #allocation4 [shape = 'u8[4096]{0}', space=vmem, size = 0x1000, scoped, tag = 'output window, operand 1, single buffered']
    #allocation5 [shape = 's32[1]{0}', space=sflag, size = 0x4, scoped, tag = 'scoped memory for tpu_custom_call.1']
    %15 = vsyncpa [#allocation3], 0
    %16 = vsyncpa [#allocation5], 0
    // Predicated region
    $region2: #{tpu_custom_call.1} parent=1 // pred_check
      _
    $region3: #{tpu_custom_call.1} parent=1 // pred_check_branch
      %18 = sbr.rel (0) target = $region5
    $region4: #{tpu_custom_call.1} parent=1 // pred_region
      _
    $region5: #{tpu_custom_call.1} parent=1 // pred_fallthru
      _
    // Predicated region
    $region6: #{tpu_custom_call.1} parent=1 // pred_check
      _
    $region7: #{tpu_custom_call.1} parent=1 // pred_check_branch
      %20 = sbr.rel (0) target = $region9
    $region8: #{tpu_custom_call.1} parent=1 // pred_region
      _
    $region9: #{tpu_custom_call.1} parent=1 // pred_fallthru
      _
    // Predicated region
    $region10: #{tpu_custom_call.1} parent=1 // pred_check
      _
    $region11: #{tpu_custom_call.1} parent=1 // pred_check_branch
      %22 = sbr.rel (0) target = $region13
    $region12: #{tpu_custom_call.1} parent=1 // pred_region
      _
    $region13: #{tpu_custom_call.1} parent=1 // pred_fallthru
      _
    // Predicated region
    $region14: #{tpu_custom_call.1} parent=1 // pred_check
      _
    $region15: #{tpu_custom_call.1} parent=1 // pred_check_branch
      %24 = sbr.rel (0) target = $region17
    $region16: #{tpu_custom_call.1} parent=1 // pred_region
      _
    $region17: #{tpu_custom_call.1} parent=1 // pred_fallthru
      _
    // Predicated region
    $region18: #{tpu_custom_call.1} parent=1 // pred_check
      _
    $region19: #{tpu_custom_call.1} parent=1 // pred_check_branch
      %26 = sbr.rel (0) target = $region21
    $region20: #{tpu_custom_call.1} parent=1 // pred_region
      _
    $region21: #{tpu_custom_call.1} parent=1 // pred_fallthru
      _
    // Predicated region
    $region22: #{tpu_custom_call.1} parent=1 // pred_check
      _
    $region23: #{tpu_custom_call.1} parent=1 // pred_check_branch
      %28 = sbr.rel (0) target = $region25
    $region24: #{tpu_custom_call.1} parent=1 // pred_region
      _
    $region25: #{tpu_custom_call.1} parent=1 // pred_fallthru
      _
    // Predicated region
    $region26: #{tpu_custom_call.1} parent=1 // pred_check
      _
    $region27: #{tpu_custom_call.1} parent=1 // pred_check_branch
      %30 = sbr.rel (0) target = $region29
    $region28: #{tpu_custom_call.1} parent=1 // pred_region
      _
    $region29: #{tpu_custom_call.1} parent=1 // pred_fallthru
      _
    // Predicated region
    $region30: #{tpu_custom_call.1} parent=1 // pred_check
      _
    $region31: #{tpu_custom_call.1} parent=1 // pred_check_branch
      %32 = sbr.rel (0) target = $region33
    $region32: #{tpu_custom_call.1} parent=1 // pred_region
      _
    $region33: #{tpu_custom_call.1} parent=1 // pred_fallthru
      _
    %v33 = vld [vmem:[%s0] sm:$0x1]
    %v34 = vld [vmem:[%s0 + $0x1] sm:$0xff]
    %v35 = vld [vmem:[%s0 + $0x9] sm:$0xff]
    %v36 = vld [vmem:[%s1] sm:$0xff]
    %v37 = vld [vmem:[%s1 + $0x8] sm:$0xff]
    %s38 = scalar_lea.vmem %s1, 16
    %v39 = vld [vmem:[%s38] ss:$8 sm:$0x3]
    %v40 = vld [vmem:[%s1 + $0x10] sm:$0xfe]
    %v41 = vld [vmem:[%s1 + $0x18] sm:$0xfe]
    %v42 = vld [vmem:[%s1 + $0x20] sm:$0x1]
    %v43 = vld [vmem:[%s1 + $0x28] sm:$0x1]
    %v44 = vld [vmem:[%s2] sm:$0xff]
    %v45 = vld [vmem:[%s2 + $0x8] sm:$0x1]
    %v46 = vld [vmem:[%s3] sm:$0xff]
    %v47 = vld [vmem:[%s3 + $0x8] sm:$0xff]
    %v48 = vld [vmem:[%s3 + $0x10] sm:$0xff]
    %v49 = vld [vmem:[%s3 + $0x18] sm:$0xff]
    %v50 = vld [vmem:[%s3 + $0x20] sm:$0xff]
    %v51 = vld [vmem:[%s3 + $0x28] sm:$0xff]
    %v52 = vld [vmem:[%s3 + $0x30] sm:$0xff]
    %v53 = vld [vmem:[%s3 + $0x38] sm:$0xff]
    %v54 = vld [vmem:[%s3 + $0x40] sm:$0xff]
    %v55 = vld [vmem:[%s3 + $0x48] sm:$0xff]
    %v56 = vld [vmem:[%s3 + $0x50] sm:$0xff]
    %v57 = vld [vmem:[%s3 + $0x58] sm:$0xff]
    %v58 = vld [vmem:[%s3 + $0x60] sm:$0xff]
    %v59 = vld [vmem:[%s3 + $0x68] sm:$0xff]
    %v60 = vld [vmem:[%s3 + $0x70] sm:$0xff]
    %v61 = vld [vmem:[%s3 + $0x78] sm:$0xff]
    %v62 = vld [vmem:[%s3 + $0x80] sm:$0xff]
    %v63 = vld [vmem:[%s4] sm:$0x3]
    %v64 = vld [vmem:[%s4 + $0x2] sm:$0x1]
    %v65 = vld [vmem:[%s4 + $0x3] sm:$0x1]
    %v66 = vld [vmem:[%s4 + $0x4] sm:$0x1]
    %v67 = vld [vmem:[%s4 + $0x5] sm:$0x1]
    %v68 = vld [vmem:[%s4 + $0x6] sm:$0x1]
    %v69 = vld [vmem:[%s4 + $0x7] sm:$0x1]
    %v71 = vlaneseq
    %v72 = vshrl.u32 %v71, 7
    %v73 = vsub.s32 0, %v72
    %v74 = vrot.slane %v63, %v73
    %v75 = vlaneseq
    %v76 = vshrl.u32 %v75, 7
    %v77 = vsub.s32 1, %v76
    %v78 = vrot.slane %v63, %v77
    %vm81 = vcmask 64512
    %v83 = vsel %vm81, %v33, 0
    %85 = vmatprep.subr.mxu0 0.0
    %86 = vmatpush1.msra.mxu0 0.0
    %87 = vmatprep.subr.mxu0 0.0
    %88 = vmatpush1.msra.mxu0 0.0
    %89 = vmatprep.subr.mxu0 0.0
    %90 = vmatpush1.msra.mxu0 0.0
    %91 = vmatprep.subr.mxu0 0.0
    %92 = vmatpush1.msra.mxu0 0.0
    %93 = vmatprep.subr.mxu0 0.0
    %94 = vmatpush1.msra.mxu0 0.0
    %95 = vmatprep.subr.mxu0 0.0
    %96 = vmatpush1.msra.mxu0 0.0
    %97 = vmatprep.subr.mxu0 0.0
    %98 = vmatpush1.msra.mxu0 0.0
    %99 = vmatprep.subr.mxu0 0.0
    %100 = vmatpush1.msra.mxu0 0.0
    %101 = vmatprep.subr.mxu0 0.0
    %102 = vmatpush1.msra.mxu0 0.0
    %103 = vmatprep.subr.mxu0 0.0
    %104 = vmatpush1.msra.mxu0 0.0
    %105 = vmatprep.subr.mxu0 0.0
    %106 = vmatpush1.msra.mxu0 0.0
    %107 = vmatprep.subr.mxu0 0.0
    %108 = vmatpush1.msra.mxu0 0.0
    %109 = vmatprep.subr.mxu0 0.0
    %110 = vmatpush1.msra.mxu0 0.0
    %111 = vmatprep.subr.mxu0 0.0
    %112 = vmatpush1.msra.mxu0 0.0
    %113 = vmatprep.subr.mxu0 0.0
    %114 = vmatpush1.msra.mxu0 0.0
    %115 = vmatprep.subr.mxu0 %v37
    %116 = vmatpush1.msra.mxu0 %v36
    %117 = vmatprep.subr.mxu0 0.0
    %118 = vmatpush2.msra.mxu0 0.0
    %119 = vmatprep.subr.mxu0 0.0
    %120 = vmatpush2.msra.mxu0 0.0
    %121 = vmatprep.subr.mxu0 0.0
    %122 = vmatpush2.msra.mxu0 0.0
    %123 = vmatprep.subr.mxu0 0.0
    %124 = vmatpush2.msra.mxu0 0.0
    %125 = vmatprep.subr.mxu0 0.0
    %126 = vmatpush2.msra.mxu0 0.0
    %127 = vmatprep.subr.mxu0 0.0
    %128 = vmatpush2.msra.mxu0 0.0
    %129 = vmatprep.subr.mxu0 0.0
    %130 = vmatpush2.msra.mxu0 0.0
    %131 = vmatprep.subr.mxu0 0.0
    %132 = vmatpush2.msra.mxu0 0.0
    %133 = vmatprep.subr.mxu0 0.0
    %134 = vmatpush2.msra.mxu0 0.0
    %135 = vmatprep.subr.mxu0 0.0
    %136 = vmatpush2.msra.mxu0 0.0
    %137 = vmatprep.subr.mxu0 0.0
    %138 = vmatpush2.msra.mxu0 0.0
    %139 = vmatprep.subr.mxu0 0.0
    %140 = vmatpush2.msra.mxu0 0.0
    %141 = vmatprep.subr.mxu0 0.0
    %142 = vmatpush2.msra.mxu0 0.0
    %143 = vmatprep.subr.mxu0 0.0
    %144 = vmatpush2.msra.mxu0 0.0
    %145 = vmatprep.subr.mxu0 0.0
    %146 = vmatpush2.msra.mxu0 0.0
    %147 = vmatprep.subr.mxu0 0.0
    %148 = vmatpush2.msra.mxu0 0.0
    %149 = vmatprep.mubr.f32.mxu0 0.0
    %150 = vmatmul.mubr.f32.gmra.mxu0 %v83
    %v151 = vpop.f32.mrf.mxu0
    %v152 = vadd.f32 %v74, %v151
    %v153 = vpop.f32.mrf.mxu0
    %v154 = vadd.f32 %v78, %v153
    %155 = vdwg.mxu0
    %157 = vset.pattern.permute.xlu0 0
    %158 = vperm.xlu0 %157, %v35
    %v159 = vpop.permute.xlu0 %158
    %v162 = vlaneseq
    %v163 = vshrl.u32 %v162, 7
    %v164 = vsub.s32 0, %v163
    %v165 = vrot.slane %v39, %v164
    %v166 = vlaneseq
    %v167 = vshrl.u32 %v166, 7
    %v168 = vsub.s32 1, %v167
    %v169 = vrot.slane %v39, %v168
    %v172 = vmul.f32 %v159, %v165
    %v173 = vmul.f32 %v159, %v169
    %v174 = vlaneseq
    %v175 = vshrl.u32 %v174, 7
    %v176 = vsub.s32 0, %v175
    %v177 = vrot.slane %v152, %v176
    %v178 = vlaneseq
    %v179 = vshrl.u32 %v178, 7
    %v180 = vsub.s32 0, %v179
    %v181 = vrot.slane %v154, %v180
    %v182 = vadd.f32 %v177, %v172
    %v183 = vadd.f32 %v181, %v173
    %184 = vmatprep.subr.mxu0 0.0
    %185 = vmatpush1.msra.mxu0 0.0
    %186 = vmatprep.subr.mxu0 0.0
    %187 = vmatpush1.msra.mxu0 0.0
    %188 = vmatprep.subr.mxu0 0.0
    %189 = vmatpush1.msra.mxu0 0.0
    %190 = vmatprep.subr.mxu0 0.0
    %191 = vmatpush1.msra.mxu0 0.0
    %192 = vmatprep.subr.mxu0 0.0
    %193 = vmatpush1.msra.mxu0 0.0
    %194 = vmatprep.subr.mxu0 0.0
    %195 = vmatpush1.msra.mxu0 0.0
    %196 = vmatprep.subr.mxu0 0.0
    %197 = vmatpush1.msra.mxu0 0.0
    %198 = vmatprep.subr.mxu0 0.0
    %199 = vmatpush1.msra.mxu0 0.0
    %200 = vmatprep.subr.mxu0 0.0
    %201 = vmatpush1.msra.mxu0 0.0
    %202 = vmatprep.subr.mxu0 0.0
    %203 = vmatpush1.msra.mxu0 0.0
    %204 = vmatprep.subr.mxu0 0.0
    %205 = vmatpush1.msra.mxu0 0.0
    %206 = vmatprep.subr.mxu0 0.0
    %207 = vmatpush1.msra.mxu0 0.0
    %208 = vmatprep.subr.mxu0 0.0
    %209 = vmatpush1.msra.mxu0 0.0
    %210 = vmatprep.subr.mxu0 0.0
    %211 = vmatpush1.msra.mxu0 0.0
    %212 = vmatprep.subr.mxu0 0.0
    %213 = vmatpush1.msra.mxu0 0.0
    %214 = vmatprep.subr.mxu0 0.0
    %215 = vmatpush1.msra.mxu0 %v44
    %216 = vmatprep.subr.mxu0 0.0
    %217 = vmatpush2.msra.mxu0 0.0
    %218 = vmatprep.subr.mxu0 0.0
    %219 = vmatpush2.msra.mxu0 0.0
    %220 = vmatprep.subr.mxu0 0.0
    %221 = vmatpush2.msra.mxu0 0.0
    %222 = vmatprep.subr.mxu0 0.0
    %223 = vmatpush2.msra.mxu0 0.0
    %224 = vmatprep.subr.mxu0 0.0
    %225 = vmatpush2.msra.mxu0 0.0
    %226 = vmatprep.subr.mxu0 0.0
    %227 = vmatpush2.msra.mxu0 0.0
    %228 = vmatprep.subr.mxu0 0.0
    %229 = vmatpush2.msra.mxu0 0.0
    %230 = vmatprep.subr.mxu0 0.0
    %231 = vmatpush2.msra.mxu0 0.0
    %232 = vmatprep.subr.mxu0 0.0
    %233 = vmatpush2.msra.mxu0 0.0
    %234 = vmatprep.subr.mxu0 0.0
    %235 = vmatpush2.msra.mxu0 0.0
    %236 = vmatprep.subr.mxu0 0.0
    %237 = vmatpush2.msra.mxu0 0.0
    %238 = vmatprep.subr.mxu0 0.0
    %239 = vmatpush2.msra.mxu0 0.0
    %240 = vmatprep.subr.mxu0 0.0
    %241 = vmatpush2.msra.mxu0 0.0
    %242 = vmatprep.subr.mxu0 0.0
    %243 = vmatpush2.msra.mxu0 0.0
    %244 = vmatprep.subr.mxu0 0.0
    %245 = vmatpush2.msra.mxu0 0.0
    %246 = vmatprep.subr.mxu0 0.0
    %247 = vmatpush2.msra.mxu0 0.0
    %248 = vmatprep.mubr.f32.mxu0 0.0
    %249 = vmatmul.mubr.f32.gmra.mxu0 %v83
    %v250 = vpop.f32.mrf.mxu0
    %v251 = vadd.f32 %v67, %v250
    %v252 = vpop.f32.mrf.mxu0
    %253 = vdwg.mxu0
    %v254 = vlaneseq
    %v255 = vshrl.u32 %v254, 7
    %v256 = vsub.s32 0, %v255
    %v257 = vrot.slane %v45, %v256
    %v258 = vmul.f32 %v159, %v257
    %v259 = vlaneseq
    %v260 = vshrl.u32 %v259, 7
    %v261 = vsub.s32 0, %v260
    %v262 = vrot.slane %v251, %v261
    %v263 = vadd.f32 %v262, %v258
    %v264 = vmax.f32 %v263, 0.0
    %v265 = vld [vmem:[%s7] sm:$0xff]
    %v266 = vld [vmem:[%s7 + $0x8] sm:$0xff]
    %v267 = vld [vmem:[%s7 + $0x10] sm:$0xff]
    %v268 = vld [vmem:[%s7 + $0x18] sm:$0xff]
    %v269 = vld [vmem:[%s7 + $0x20] sm:$0xff]
    %v270 = vld [vmem:[%s7 + $0x28] sm:$0xff]
    %v271 = vld [vmem:[%s7 + $0x30] sm:$0xff]
    %v272 = vld [vmem:[%s7 + $0x38] sm:$0xff]
    %v273 = vld [vmem:[%s7 + $0x40] sm:$0xff]
    %v274 = vld [vmem:[%s7 + $0x48] sm:$0xff]
    %v275 = vld [vmem:[%s7 + $0x50] sm:$0xff]
    %v276 = vld [vmem:[%s7 + $0x58] sm:$0xff]
    %v277 = vld [vmem:[%s7 + $0x60] sm:$0xff]
    %v278 = vld [vmem:[%s7 + $0x68] sm:$0xff]
    %v279 = vld [vmem:[%s7 + $0x70] sm:$0xff]
    %v280 = vld [vmem:[%s7 + $0x78] sm:$0xff]
    %v282 = vlaneseq
    %v283 = vshrl.u32 %v282, 7
    %v284 = vsub.s32 0, %v283
    %v285 = vrot.slane %v68, %v284
    %287 = vmatprep.subr.mxu0 0.0
    %288 = vmatpush1.msra.mxu0 %v280
    %289 = vmatprep.subr.mxu0 0.0
    %290 = vmatpush1.msra.mxu0 %v279
    %291 = vmatprep.subr.mxu0 0.0
    %292 = vmatpush1.msra.mxu0 %v278
    %293 = vmatprep.subr.mxu0 0.0
    %294 = vmatpush1.msra.mxu0 %v277
    %295 = vmatprep.subr.mxu0 0.0
    %296 = vmatpush1.msra.mxu0 %v276
    %297 = vmatprep.subr.mxu0 0.0
    %298 = vmatpush1.msra.mxu0 %v275
    %299 = vmatprep.subr.mxu0 0.0
    %300 = vmatpush1.msra.mxu0 %v274
    %301 = vmatprep.subr.mxu0 0.0
    %302 = vmatpush1.msra.mxu0 %v273
    %303 = vmatprep.subr.mxu0 0.0
    %304 = vmatpush1.msra.mxu0 %v272
    %305 = vmatprep.subr.mxu0 0.0
    %306 = vmatpush1.msra.mxu0 %v271
    %307 = vmatprep.subr.mxu0 0.0
    %308 = vmatpush1.msra.mxu0 %v270
    %309 = vmatprep.subr.mxu0 0.0
    %310 = vmatpush1.msra.mxu0 %v269
    %311 = vmatprep.subr.mxu0 0.0
    %312 = vmatpush1.msra.mxu0 %v268
    %313 = vmatprep.subr.mxu0 0.0
    %314 = vmatpush1.msra.mxu0 %v267
    %315 = vmatprep.subr.mxu0 0.0
    %316 = vmatpush1.msra.mxu0 %v266
    %317 = vmatprep.subr.mxu0 0.0
    %318 = vmatpush1.msra.mxu0 %v265
    %319 = vmatprep.subr.mxu0 0.0
    %320 = vmatpush2.msra.mxu0 0.0
    %321 = vmatprep.subr.mxu0 0.0
    %322 = vmatpush2.msra.mxu0 0.0
    %323 = vmatprep.subr.mxu0 0.0
    %324 = vmatpush2.msra.mxu0 0.0
    %325 = vmatprep.subr.mxu0 0.0
    %326 = vmatpush2.msra.mxu0 0.0
    %327 = vmatprep.subr.mxu0 0.0
    %328 = vmatpush2.msra.mxu0 0.0
    %329 = vmatprep.subr.mxu0 0.0
    %330 = vmatpush2.msra.mxu0 0.0
    %331 = vmatprep.subr.mxu0 0.0
    %332 = vmatpush2.msra.mxu0 0.0
    %333 = vmatprep.subr.mxu0 0.0
    %334 = vmatpush2.msra.mxu0 0.0
    %335 = vmatprep.subr.mxu0 0.0
    %336 = vmatpush2.msra.mxu0 0.0
    %337 = vmatprep.subr.mxu0 0.0
    %338 = vmatpush2.msra.mxu0 0.0
    %339 = vmatprep.subr.mxu0 0.0
    %340 = vmatpush2.msra.mxu0 0.0
    %341 = vmatprep.subr.mxu0 0.0
    %342 = vmatpush2.msra.mxu0 0.0
    %343 = vmatprep.subr.mxu0 0.0
    %344 = vmatpush2.msra.mxu0 0.0
    %345 = vmatprep.subr.mxu0 0.0
    %346 = vmatpush2.msra.mxu0 0.0
    %347 = vmatprep.subr.mxu0 0.0
    %348 = vmatpush2.msra.mxu0 0.0
    %349 = vmatprep.subr.mxu0 0.0
    %350 = vmatpush2.msra.mxu0 0.0
    %351 = vmatprep.mubr.f32.mxu0 0.0
    %352 = vmatmul.mubr.f32.gmra.mxu0 %v264
    %v353 = vpop.f32.mrf.mxu0
    %v354 = vadd.f32 %v285, %v353
    %v355 = vpop.f32.mrf.mxu0
    %356 = vdwg.mxu0
    %v357 = vmax.f32 %v354, 0.0
    %v359 = vlaneseq
    %v360 = vshrl.u32 %v359, 7
    %v361 = vsub.s32 0, %v360
    %v362 = vrot.slane %v69, %v361
    %vm364 = vcmask 523264
    %v366 = vsel %vm364, %v357, 0
    %368 = vmatprep.subr.mxu0 0.0
    %369 = vmatpush1.msra.mxu0 0.0
    %370 = vmatprep.subr.mxu0 0.0
    %371 = vmatpush1.msra.mxu0 0.0
    %372 = vmatprep.subr.mxu0 0.0
    %373 = vmatpush1.msra.mxu0 0.0
    %374 = vmatprep.subr.mxu0 0.0
    %375 = vmatpush1.msra.mxu0 0.0
    %376 = vmatprep.subr.mxu0 0.0
    %377 = vmatpush1.msra.mxu0 0.0
    %378 = vmatprep.subr.mxu0 0.0
    %379 = vmatpush1.msra.mxu0 0.0
    %380 = vmatprep.subr.mxu0 0.0
    %381 = vmatpush1.msra.mxu0 0.0
    %382 = vmatprep.subr.mxu0 0.0
    %383 = vmatpush1.msra.mxu0 0.0
    %384 = vmatprep.subr.mxu0 0.0
    %385 = vmatpush1.msra.mxu0 %v61
    %386 = vmatprep.subr.mxu0 0.0
    %387 = vmatpush1.msra.mxu0 %v60
    %388 = vmatprep.subr.mxu0 0.0
    %389 = vmatpush1.msra.mxu0 %v59
    %390 = vmatprep.subr.mxu0 0.0
    %391 = vmatpush1.msra.mxu0 %v58
    %392 = vmatprep.subr.mxu0 0.0
    %393 = vmatpush1.msra.mxu0 %v57
    %394 = vmatprep.subr.mxu0 0.0
    %395 = vmatpush1.msra.mxu0 %v56
    %396 = vmatprep.subr.mxu0 0.0
    %397 = vmatpush1.msra.mxu0 %v55
    %398 = vmatprep.subr.mxu0 0.0
    %399 = vmatpush1.msra.mxu0 %v54
    %400 = vmatprep.subr.mxu0 0.0
    %401 = vmatpush2.msra.mxu0 0.0
    %402 = vmatprep.subr.mxu0 0.0
    %403 = vmatpush2.msra.mxu0 0.0
    %404 = vmatprep.subr.mxu0 0.0
    %405 = vmatpush2.msra.mxu0 0.0
    %406 = vmatprep.subr.mxu0 0.0
    %407 = vmatpush2.msra.mxu0 0.0
    %408 = vmatprep.subr.mxu0 0.0
    %409 = vmatpush2.msra.mxu0 0.0
    %410 = vmatprep.subr.mxu0 0.0
    %411 = vmatpush2.msra.mxu0 0.0
    %412 = vmatprep.subr.mxu0 0.0
    %413 = vmatpush2.msra.mxu0 0.0
    %414 = vmatprep.subr.mxu0 0.0
    %415 = vmatpush2.msra.mxu0 0.0
    %416 = vmatprep.subr.mxu0 0.0
    %417 = vmatpush2.msra.mxu0 0.0
    %418 = vmatprep.subr.mxu0 0.0
    %419 = vmatpush2.msra.mxu0 0.0
    %420 = vmatprep.subr.mxu0 0.0
    %421 = vmatpush2.msra.mxu0 0.0
    %422 = vmatprep.subr.mxu0 0.0
    %423 = vmatpush2.msra.mxu0 0.0
    %424 = vmatprep.subr.mxu0 0.0
    %425 = vmatpush2.msra.mxu0 0.0
    %426 = vmatprep.subr.mxu0 0.0
    %427 = vmatpush2.msra.mxu0 0.0
    %428 = vmatprep.subr.mxu0 0.0
    %429 = vmatpush2.msra.mxu0 0.0
    %430 = vmatprep.subr.mxu0 0.0
    %431 = vmatpush2.msra.mxu0 0.0
    %432 = vmatprep.mubr.f32.mxu0 0.0
    %433 = vmatmul.mubr.f32.gmra.mxu0 %v366
    %v434 = vpop.f32.mrf.mxu0
    %v435 = vadd.f32 %v362, %v434
    %v436 = vpop.f32.mrf.mxu0
    %437 = vdwg.mxu0
    %v438 = vtanh.pop %v435
    %v439 = vmul.f32 %v438, 0.2
    %v441 = vlaneseq
    %v442 = vshrl.u32 %v441, 7
    %v443 = vsub.s32 0, %v442
    %v444 = vrot.slane %v66, %v443
    %v446 = vadd.f32 %v439, %v444
    %v447 = vsub.f32 1.0, %v62
    %v448 = vmul.f32 %v447, -1000.0
    %v451 = vcombine.low %v182, %v183
    %v452 = vcombine.high %v182, %v183
    %v454 = vunpack.c.l.s4 1966171168
    %v455 = vunpack.c.0.s8 %v454
    %v456 = vlaneseq
    %v457 = vshrl.u32 %v456, 7
    %v458 = vsub.s32 %v455, %v457
    %v459 = vrot.slane %v451, %v458
    %v461 = vunpack.c.l.s4 1966171168
    %v462 = vunpack.c.0.s8 %v461
    %v463 = vlaneseq
    %v464 = vshrl.u32 %v463, 7
    %v465 = vsub.s32 %v462, %v464
    %v466 = vrot.slane %v452, %v465
    %v467 = vcombine.high %v459, %v459
    %v468 = vcombine.high %v466, %v466
    %v470 = vunpack.c.l.s4 1966171168
    %v471 = vunpack.c.0.s8 %v470
    %v472 = vlaneseq
    %v473 = vshrl.u32 %v472, 7
    %v474 = vsub.s32 %v471, %v473
    %v475 = vrot.slane %v459, %v474
    %v477 = vunpack.c.l.s4 1966171168
    %v478 = vunpack.c.0.s8 %v477
    %v479 = vlaneseq
    %v480 = vshrl.u32 %v479, 7
    %v481 = vsub.s32 %v478, %v480
    %v482 = vrot.slane %v466, %v481
    %v484 = vunpack.c.l.s4 1966171168
    %v485 = vunpack.c.0.s8 %v484
    %v486 = vlaneseq
    %v487 = vshrl.u32 %v486, 7
    %v488 = vsub.s32 %v485, %v487
    %v489 = vrot.slane %v467, %v488
    %v491 = vunpack.c.l.s4 1966171168
    %v492 = vunpack.c.0.s8 %v491
    %v493 = vlaneseq
    %v494 = vshrl.u32 %v493, 7
    %v495 = vsub.s32 %v492, %v494
    %v496 = vrot.slane %v468, %v495
    %v497 = vcombine.high %v475, %v475
    %v498 = vcombine.high %v482, %v482
    %v499 = vcombine.high %v489, %v489
    %v500 = vcombine.high %v496, %v496
    %v501 = vlaneseq
    %v502 = vshrl.u32 %v501, 7
    %v503 = vsub.s32 0, %v502
    %v504 = vrot.slane %v475, %v503
    %v505 = vlaneseq
    %v506 = vshrl.u32 %v505, 7
    %v507 = vsub.s32 1, %v506
    %v508 = vrot.slane %v475, %v507
    %v509 = vlaneseq
    %v510 = vshrl.u32 %v509, 7
    %v511 = vsub.s32 0, %v510
    %v512 = vrot.slane %v489, %v511
    %v513 = vlaneseq
    %v514 = vshrl.u32 %v513, 7
    %v515 = vsub.s32 1, %v514
    %v516 = vrot.slane %v489, %v515
    %v517 = vlaneseq
    %v518 = vshrl.u32 %v517, 7
    %v519 = vsub.s32 0, %v518
    %v520 = vrot.slane %v497, %v519
    %v521 = vlaneseq
    %v522 = vshrl.u32 %v521, 7
    %v523 = vsub.s32 1, %v522
    %v524 = vrot.slane %v497, %v523
    %v525 = vlaneseq
    %v526 = vshrl.u32 %v525, 7
    %v527 = vsub.s32 0, %v526
    %v528 = vrot.slane %v499, %v527
    %v529 = vlaneseq
    %v530 = vshrl.u32 %v529, 7
    %v531 = vsub.s32 1, %v530
    %v532 = vrot.slane %v499, %v531
    %v533 = vlaneseq
    %v534 = vshrl.u32 %v533, 7
    %v535 = vsub.s32 0, %v534
    %v536 = vrot.slane %v482, %v535
    %v537 = vlaneseq
    %v538 = vshrl.u32 %v537, 7
    %v539 = vsub.s32 1, %v538
    %v540 = vrot.slane %v482, %v539
    %v541 = vlaneseq
    %v542 = vshrl.u32 %v541, 7
    %v543 = vsub.s32 0, %v542
    %v544 = vrot.slane %v496, %v543
    %v545 = vlaneseq
    %v546 = vshrl.u32 %v545, 7
    %v547 = vsub.s32 1, %v546
    %v548 = vrot.slane %v496, %v547
    %v549 = vlaneseq
    %v550 = vshrl.u32 %v549, 7
    %v551 = vsub.s32 0, %v550
    %v552 = vrot.slane %v498, %v551
    %v553 = vlaneseq
    %v554 = vshrl.u32 %v553, 7
    %v555 = vsub.s32 1, %v554
    %v556 = vrot.slane %v498, %v555
    %v557 = vlaneseq
    %v558 = vshrl.u32 %v557, 7
    %v559 = vsub.s32 0, %v558
    %v560 = vrot.slane %v500, %v559
    %v561 = vlaneseq
    %v562 = vshrl.u32 %v561, 7
    %v563 = vsub.s32 1, %v562
    %v564 = vrot.slane %v500, %v563
    %v581 = vadd.f32 %v504, %v40
    %v582 = vadd.f32 %v508, %v41
    %v583 = vadd.f32 %v504, %v42
    %v584 = vadd.f32 %v508, %v43
    %v585 = vadd.f32 %v512, %v40
    %v586 = vadd.f32 %v516, %v41
    %v587 = vadd.f32 %v512, %v42
    %v588 = vadd.f32 %v516, %v43
    %v589 = vadd.f32 %v520, %v40
    %v590 = vadd.f32 %v524, %v41
    %v591 = vadd.f32 %v520, %v42
    %v592 = vadd.f32 %v524, %v43
    %v593 = vadd.f32 %v528, %v40
    %v594 = vadd.f32 %v532, %v41
    %v595 = vadd.f32 %v528, %v42
    %v596 = vadd.f32 %v532, %v43
    %v597 = vadd.f32 %v536, %v40
    %v598 = vadd.f32 %v540, %v41
    %v599 = vadd.f32 %v536, %v42
    %v600 = vadd.f32 %v540, %v43
    %v601 = vadd.f32 %v544, %v40
    %v602 = vadd.f32 %v548, %v41
    %v603 = vadd.f32 %v544, %v42
    %v604 = vadd.f32 %v548, %v43
    %v605 = vadd.f32 %v552, %v40
    %v606 = vadd.f32 %v556, %v41
    %v607 = vadd.f32 %v552, %v42
    %v608 = vadd.f32 %v556, %v43
    %v609 = vadd.f32 %v560, %v40
    %v610 = vadd.f32 %v564, %v41
    %v611 = vadd.f32 %v560, %v42
    %v612 = vadd.f32 %v564, %v43
    %v613 = vmax.f32 %v581, 0.0
    %v614 = vmax.f32 %v582, 0.0
    %v615 = vmax.f32 %v583, 0.0
    %v616 = vmax.f32 %v584, 0.0
    %v617 = vmax.f32 %v585, 0.0
    %v618 = vmax.f32 %v586, 0.0
    %v619 = vmax.f32 %v587, 0.0
    %v620 = vmax.f32 %v588, 0.0
    %v621 = vmax.f32 %v589, 0.0
    %v622 = vmax.f32 %v590, 0.0
    %v623 = vmax.f32 %v591, 0.0
    %v624 = vmax.f32 %v592, 0.0
    %v625 = vmax.f32 %v593, 0.0
    %v626 = vmax.f32 %v594, 0.0
    %v627 = vmax.f32 %v595, 0.0
    %v628 = vmax.f32 %v596, 0.0
    %v629 = vmax.f32 %v597, 0.0
    %v630 = vmax.f32 %v598, 0.0
    %v631 = vmax.f32 %v599, 0.0
    %v632 = vmax.f32 %v600, 0.0
    %v633 = vmax.f32 %v601, 0.0
    %v634 = vmax.f32 %v602, 0.0
    %v635 = vmax.f32 %v603, 0.0
    %v636 = vmax.f32 %v604, 0.0
    %v637 = vmax.f32 %v605, 0.0
    %v638 = vmax.f32 %v606, 0.0
    %v639 = vmax.f32 %v607, 0.0
    %v640 = vmax.f32 %v608, 0.0
    %v641 = vmax.f32 %v609, 0.0
    %v642 = vmax.f32 %v610, 0.0
    %v643 = vmax.f32 %v611, 0.0
    %v644 = vmax.f32 %v612, 0.0
    %vm677 = vcmask 1046528
    %v678 = vrot.slane %v613, 1
    %v679 = vrot.slane %v615, 1
    %v680 = vsel %vm677, %v678, %v679
    %v681 = vrot.slane %v614, 1
    %v682 = vrot.slane %v616, 1
    %v683 = vsel %vm677, %v681, %v682
    %v684 = vrot.slane %v617, 1
    %v685 = vrot.slane %v619, 1
    %v686 = vsel %vm677, %v684, %v685
    %v687 = vrot.slane %v618, 1
    %v688 = vrot.slane %v620, 1
    %v689 = vsel %vm677, %v687, %v688
    %v690 = vrot.slane %v621, 1
    %v691 = vrot.slane %v623, 1
    %v692 = vsel %vm677, %v690, %v691
    %v693 = vrot.slane %v622, 1
    %v694 = vrot.slane %v624, 1
    %v695 = vsel %vm677, %v693, %v694
    %v696 = vrot.slane %v625, 1
    %v697 = vrot.slane %v627, 1
    %v698 = vsel %vm677, %v696, %v697
    %v699 = vrot.slane %v626, 1
    %v700 = vrot.slane %v628, 1
    %v701 = vsel %vm677, %v699, %v700
    %v702 = vrot.slane %v629, 1
    %v703 = vrot.slane %v631, 1
    %v704 = vsel %vm677, %v702, %v703
    %v705 = vrot.slane %v630, 1
    %v706 = vrot.slane %v632, 1
    %v707 = vsel %vm677, %v705, %v706
    %v708 = vrot.slane %v633, 1
    %v709 = vrot.slane %v635, 1
    %v710 = vsel %vm677, %v708, %v709
    %v711 = vrot.slane %v634, 1
    %v712 = vrot.slane %v636, 1
    %v713 = vsel %vm677, %v711, %v712
    %v714 = vrot.slane %v637, 1
    %v715 = vrot.slane %v639, 1
    %v716 = vsel %vm677, %v714, %v715
    %v717 = vrot.slane %v638, 1
    %v718 = vrot.slane %v640, 1
    %v719 = vsel %vm677, %v717, %v718
    %v720 = vrot.slane %v641, 1
    %v721 = vrot.slane %v643, 1
    %v722 = vsel %vm677, %v720, %v721
    %v723 = vrot.slane %v642, 1
    %v724 = vrot.slane %v644, 1
    %v725 = vsel %vm677, %v723, %v724
    %v742 = vld [vmem:[%s5] sm:$0xff]
    %v743 = vld [vmem:[%s5 + $0x8] sm:$0xff]
    %v744 = vld [vmem:[%s5 + $0x10] sm:$0xff]
    %v745 = vld [vmem:[%s5 + $0x18] sm:$0xff]
    %v746 = vld [vmem:[%s5 + $0x20] sm:$0xff]
    %v747 = vld [vmem:[%s5 + $0x28] sm:$0xff]
    %v748 = vld [vmem:[%s5 + $0x30] sm:$0xff]
    %v749 = vld [vmem:[%s5 + $0x38] sm:$0xff]
    %v750 = vld [vmem:[%s5 + $0x40] sm:$0xff]
    %v751 = vld [vmem:[%s5 + $0x48] sm:$0xff]
    %v752 = vld [vmem:[%s5 + $0x50] sm:$0xff]
    %v753 = vld [vmem:[%s5 + $0x58] sm:$0xff]
    %v754 = vld [vmem:[%s5 + $0x60] sm:$0xff]
    %v755 = vld [vmem:[%s5 + $0x68] sm:$0xff]
    %v756 = vld [vmem:[%s5 + $0x70] sm:$0xff]
    %v757 = vld [vmem:[%s5 + $0x78] sm:$0xff]
    %v758 = vld [vmem:[%s5 + $0x80] sm:$0xff]
    %v759 = vld [vmem:[%s5 + $0x88] sm:$0xff]
    %v760 = vld [vmem:[%s5 + $0x90] sm:$0xff]
    %v761 = vld [vmem:[%s5 + $0x98] sm:$0xff]
    %v762 = vld [vmem:[%s5 + $0xa0] sm:$0xff]
    %v763 = vld [vmem:[%s5 + $0xa8] sm:$0xff]
    %v764 = vld [vmem:[%s5 + $0xb0] sm:$0xff]
    %v765 = vld [vmem:[%s5 + $0xb8] sm:$0xff]
    %v766 = vld [vmem:[%s5 + $0xc0] sm:$0xff]
    %v767 = vld [vmem:[%s5 + $0xc8] sm:$0xff]
    %v768 = vld [vmem:[%s5 + $0xd0] sm:$0xff]
    %v769 = vld [vmem:[%s5 + $0xd8] sm:$0xff]
    %v770 = vld [vmem:[%s5 + $0xe0] sm:$0xff]
    %v771 = vld [vmem:[%s5 + $0xe8] sm:$0xff]
    %v772 = vld [vmem:[%s5 + $0xf0] sm:$0xff]
    %v773 = vld [vmem:[%s5 + $0xf8] sm:$0xff]
    %v775 = vlaneseq
    %v776 = vshrl.u32 %v775, 7
    %v777 = vsub.s32 0, %v776
    %v778 = vrot.slane %v64, %v777
    %780 = vmatprep.subr.mxu0 0.0
    %781 = vmatpush1.msra.mxu0 %v757
    %782 = vmatprep.subr.mxu0 0.0
    %783 = vmatpush1.msra.mxu0 %v756
    %784 = vmatprep.subr.mxu0 0.0
    %785 = vmatpush1.msra.mxu0 %v755
    %786 = vmatprep.subr.mxu0 0.0
    %787 = vmatpush1.msra.mxu0 %v754
    %788 = vmatprep.subr.mxu0 0.0
    %789 = vmatpush1.msra.mxu0 %v753
    %790 = vmatprep.subr.mxu0 0.0
    %791 = vmatpush1.msra.mxu0 %v752
    %792 = vmatprep.subr.mxu0 0.0
    %793 = vmatpush1.msra.mxu0 %v751
    %794 = vmatprep.subr.mxu0 0.0
    %795 = vmatpush1.msra.mxu0 %v750
    %796 = vmatprep.subr.mxu0 0.0
    %797 = vmatpush1.msra.mxu0 %v749
    %798 = vmatprep.subr.mxu0 0.0
    %799 = vmatpush1.msra.mxu0 %v748
    %800 = vmatprep.subr.mxu0 0.0
    %801 = vmatpush1.msra.mxu0 %v747
    %802 = vmatprep.subr.mxu0 0.0
    %803 = vmatpush1.msra.mxu0 %v746
    %804 = vmatprep.subr.mxu0 0.0
    %805 = vmatpush1.msra.mxu0 %v745
    %806 = vmatprep.subr.mxu0 0.0
    %807 = vmatpush1.msra.mxu0 %v744
    %808 = vmatprep.subr.mxu0 0.0
    %809 = vmatpush1.msra.mxu0 %v743
    %810 = vmatprep.subr.mxu0 0.0
    %811 = vmatpush1.msra.mxu0 %v742
    %812 = vmatprep.subr.mxu0 0.0
    %813 = vmatpush2.msra.mxu0 %v773
    %814 = vmatprep.subr.mxu0 0.0
    %815 = vmatpush2.msra.mxu0 %v772
    %816 = vmatprep.subr.mxu0 0.0
    %817 = vmatpush2.msra.mxu0 %v771
    %818 = vmatprep.subr.mxu0 0.0
    %819 = vmatpush2.msra.mxu0 %v770
    %820 = vmatprep.subr.mxu0 0.0
    %821 = vmatpush2.msra.mxu0 %v769
    %822 = vmatprep.subr.mxu0 0.0
    %823 = vmatpush2.msra.mxu0 %v768
    %824 = vmatprep.subr.mxu0 0.0
    %825 = vmatpush2.msra.mxu0 %v767
    %826 = vmatprep.subr.mxu0 0.0
    %827 = vmatpush2.msra.mxu0 %v766
    %828 = vmatprep.subr.mxu0 0.0
    %829 = vmatpush2.msra.mxu0 %v765
    %830 = vmatprep.subr.mxu0 0.0
    %831 = vmatpush2.msra.mxu0 %v764
    %832 = vmatprep.subr.mxu0 0.0
    %833 = vmatpush2.msra.mxu0 %v763
    %834 = vmatprep.subr.mxu0 0.0
    %835 = vmatpush2.msra.mxu0 %v762
    %836 = vmatprep.subr.mxu0 0.0
    %837 = vmatpush2.msra.mxu0 %v761
    %838 = vmatprep.subr.mxu0 0.0
    %839 = vmatpush2.msra.mxu0 %v760
    %840 = vmatprep.subr.mxu0 0.0
    %841 = vmatpush2.msra.mxu0 %v759
    %842 = vmatprep.subr.mxu0 0.0
    %843 = vmatpush2.msra.mxu0 %v758
    %844 = vmatprep.mubr.f32.mxu0 %v683
    %845 = vmatmul.mubr.f32.gmra.mxu0 %v680
    %v846 = vpop.f32.mrf.mxu0
    %v847 = vadd.f32 %v778, %v846
    %v848 = vpop.f32.mrf.mxu0
    %849 = vmatprep.mubr.f32.mxu0 %v689
    %850 = vmatmul.mubr.f32.gmra.mxu0 %v686
    %v851 = vpop.f32.mrf.mxu0
    %v852 = vadd.f32 %v778, %v851
    %v853 = vpop.f32.mrf.mxu0
    %854 = vmatprep.mubr.f32.mxu0 %v695
    %855 = vmatmul.mubr.f32.gmra.mxu0 %v692
    %v856 = vpop.f32.mrf.mxu0
    %v857 = vadd.f32 %v778, %v856
    %v858 = vpop.f32.mrf.mxu0
    %859 = vmatprep.mubr.f32.mxu0 %v701
    %860 = vmatmul.mubr.f32.gmra.mxu0 %v698
    %v861 = vpop.f32.mrf.mxu0
    %v862 = vadd.f32 %v778, %v861
    %v863 = vpop.f32.mrf.mxu0
    %864 = vmatprep.mubr.f32.mxu0 %v707
    %865 = vmatmul.mubr.f32.gmra.mxu0 %v704
    %v866 = vpop.f32.mrf.mxu0
    %v867 = vadd.f32 %v778, %v866
    %v868 = vpop.f32.mrf.mxu0
    %869 = vmatprep.mubr.f32.mxu0 %v713
    %870 = vmatmul.mubr.f32.gmra.mxu0 %v710
    %v871 = vpop.f32.mrf.mxu0
    %v872 = vadd.f32 %v778, %v871
    %v873 = vpop.f32.mrf.mxu0
    %874 = vmatprep.mubr.f32.mxu0 %v719
    %875 = vmatmul.mubr.f32.gmra.mxu0 %v716
    %v876 = vpop.f32.mrf.mxu0
    %v877 = vadd.f32 %v778, %v876
    %v878 = vpop.f32.mrf.mxu0
    %879 = vmatprep.mubr.f32.mxu0 %v725
    %880 = vmatmul.mubr.f32.gmra.mxu0 %v722
    %v881 = vpop.f32.mrf.mxu0
    %v882 = vadd.f32 %v778, %v881
    %v883 = vpop.f32.mrf.mxu0
    %884 = vdwg.mxu0
    %v885 = vmax.f32 %v847, 0.0
    %v886 = vmax.f32 %v852, 0.0
    %v887 = vmax.f32 %v857, 0.0
    %v888 = vmax.f32 %v862, 0.0
    %v889 = vmax.f32 %v867, 0.0
    %v890 = vmax.f32 %v872, 0.0
    %v891 = vmax.f32 %v877, 0.0
    %v892 = vmax.f32 %v882, 0.0
    %v893 = vld [vmem:[%s6] sm:$0xff]
    %v894 = vld [vmem:[%s6 + $0x8] sm:$0xff]
    %v895 = vld [vmem:[%s6 + $0x10] sm:$0xff]
    %v896 = vld [vmem:[%s6 + $0x18] sm:$0xff]
    %v897 = vld [vmem:[%s6 + $0x20] sm:$0xff]
    %v898 = vld [vmem:[%s6 + $0x28] sm:$0xff]
    %v899 = vld [vmem:[%s6 + $0x30] sm:$0xff]
    %v900 = vld [vmem:[%s6 + $0x38] sm:$0xff]
    %v901 = vld [vmem:[%s6 + $0x40] sm:$0xff]
    %v902 = vld [vmem:[%s6 + $0x48] sm:$0xff]
    %v903 = vld [vmem:[%s6 + $0x50] sm:$0xff]
    %v904 = vld [vmem:[%s6 + $0x58] sm:$0xff]
    %v905 = vld [vmem:[%s6 + $0x60] sm:$0xff]
    %v906 = vld [vmem:[%s6 + $0x68] sm:$0xff]
    %v907 = vld [vmem:[%s6 + $0x70] sm:$0xff]
    %v908 = vld [vmem:[%s6 + $0x78] sm:$0xff]
    %v910 = vlaneseq
    %v911 = vshrl.u32 %v910, 7
    %v912 = vsub.s32 0, %v911
    %v913 = vrot.slane %v65, %v912
    %915 = vmatprep.subr.mxu0 0.0
    %916 = vmatpush1.msra.mxu0 %v908
    %917 = vmatprep.subr.mxu0 0.0
    %918 = vmatpush1.msra.mxu0 %v907
    %919 = vmatprep.subr.mxu0 0.0
    %920 = vmatpush1.msra.mxu0 %v906
    %921 = vmatprep.subr.mxu0 0.0
    %922 = vmatpush1.msra.mxu0 %v905
    %923 = vmatprep.subr.mxu0 0.0
    %924 = vmatpush1.msra.mxu0 %v904
    %925 = vmatprep.subr.mxu0 0.0
    %926 = vmatpush1.msra.mxu0 %v903
    %927 = vmatprep.subr.mxu0 0.0
    %928 = vmatpush1.msra.mxu0 %v902
    %929 = vmatprep.subr.mxu0 0.0
    %930 = vmatpush1.msra.mxu0 %v901
    %931 = vmatprep.subr.mxu0 0.0
    %932 = vmatpush1.msra.mxu0 %v900
    %933 = vmatprep.subr.mxu0 0.0
    %934 = vmatpush1.msra.mxu0 %v899
    %935 = vmatprep.subr.mxu0 0.0
    %936 = vmatpush1.msra.mxu0 %v898
    %937 = vmatprep.subr.mxu0 0.0
    %938 = vmatpush1.msra.mxu0 %v897
    %939 = vmatprep.subr.mxu0 0.0
    %940 = vmatpush1.msra.mxu0 %v896
    %941 = vmatprep.subr.mxu0 0.0
    %942 = vmatpush1.msra.mxu0 %v895
    %943 = vmatprep.subr.mxu0 0.0
    %944 = vmatpush1.msra.mxu0 %v894
    %945 = vmatprep.subr.mxu0 0.0
    %946 = vmatpush1.msra.mxu0 %v893
    %947 = vmatprep.subr.mxu0 0.0
    %948 = vmatpush2.msra.mxu0 0.0
    %949 = vmatprep.subr.mxu0 0.0
    %950 = vmatpush2.msra.mxu0 0.0
    %951 = vmatprep.subr.mxu0 0.0
    %952 = vmatpush2.msra.mxu0 0.0
    %953 = vmatprep.subr.mxu0 0.0
    %954 = vmatpush2.msra.mxu0 0.0
    %955 = vmatprep.subr.mxu0 0.0
    %956 = vmatpush2.msra.mxu0 0.0
    %957 = vmatprep.subr.mxu0 0.0
    %958 = vmatpush2.msra.mxu0 0.0
    %959 = vmatprep.subr.mxu0 0.0
    %960 = vmatpush2.msra.mxu0 0.0
    %961 = vmatprep.subr.mxu0 0.0
    %962 = vmatpush2.msra.mxu0 0.0
    %963 = vmatprep.subr.mxu0 0.0
    %964 = vmatpush2.msra.mxu0 0.0
    %965 = vmatprep.subr.mxu0 0.0
    %966 = vmatpush2.msra.mxu0 0.0
    %967 = vmatprep.subr.mxu0 0.0
    %968 = vmatpush2.msra.mxu0 0.0
    %969 = vmatprep.subr.mxu0 0.0
    %970 = vmatpush2.msra.mxu0 0.0
    %971 = vmatprep.subr.mxu0 0.0
    %972 = vmatpush2.msra.mxu0 0.0
    %973 = vmatprep.subr.mxu0 0.0
    %974 = vmatpush2.msra.mxu0 0.0
    %975 = vmatprep.subr.mxu0 0.0
    %976 = vmatpush2.msra.mxu0 0.0
    %977 = vmatprep.subr.mxu0 0.0
    %978 = vmatpush2.msra.mxu0 0.0
    %979 = vmatprep.mubr.f32.mxu0 0.0
    %980 = vmatmul.mubr.f32.gmra.mxu0 %v885
    %v981 = vpop.f32.mrf.mxu0
    %v982 = vadd.f32 %v913, %v981
    %v983 = vpop.f32.mrf.mxu0
    %984 = vmatprep.mubr.f32.mxu0 0.0
    %985 = vmatmul.mubr.f32.gmra.mxu0 %v886
    %v986 = vpop.f32.mrf.mxu0
    %v987 = vadd.f32 %v913, %v986
    %v988 = vpop.f32.mrf.mxu0
    %989 = vmatprep.mubr.f32.mxu0 0.0
    %990 = vmatmul.mubr.f32.gmra.mxu0 %v887
    %v991 = vpop.f32.mrf.mxu0
    %v992 = vadd.f32 %v913, %v991
    %v993 = vpop.f32.mrf.mxu0
    %994 = vmatprep.mubr.f32.mxu0 0.0
    %995 = vmatmul.mubr.f32.gmra.mxu0 %v888
    %v996 = vpop.f32.mrf.mxu0
    %v997 = vadd.f32 %v913, %v996
    %v998 = vpop.f32.mrf.mxu0
    %999 = vmatprep.mubr.f32.mxu0 0.0
    %1000 = vmatmul.mubr.f32.gmra.mxu0 %v889
    %v1001 = vpop.f32.mrf.mxu0
    %v1002 = vadd.f32 %v913, %v1001
    %v1003 = vpop.f32.mrf.mxu0
    %1004 = vmatprep.mubr.f32.mxu0 0.0
    %1005 = vmatmul.mubr.f32.gmra.mxu0 %v890
    %v1006 = vpop.f32.mrf.mxu0
    %v1007 = vadd.f32 %v913, %v1006
    %v1008 = vpop.f32.mrf.mxu0
    %1009 = vmatprep.mubr.f32.mxu0 0.0
    %1010 = vmatmul.mubr.f32.gmra.mxu0 %v891
    %v1011 = vpop.f32.mrf.mxu0
    %v1012 = vadd.f32 %v913, %v1011
    %v1013 = vpop.f32.mrf.mxu0
    %1014 = vmatprep.mubr.f32.mxu0 0.0
    %1015 = vmatmul.mubr.f32.gmra.mxu0 %v892
    %v1016 = vpop.f32.mrf.mxu0
    %v1017 = vadd.f32 %v913, %v1016
    %v1018 = vpop.f32.mrf.mxu0
    %1019 = vdwg.mxu0
    %v1020 = vmax.f32 %v982, 0.0
    %v1021 = vmax.f32 %v987, 0.0
    %v1022 = vmax.f32 %v992, 0.0
    %v1023 = vmax.f32 %v997, 0.0
    %v1024 = vmax.f32 %v1002, 0.0
    %v1025 = vmax.f32 %v1007, 0.0
    %v1026 = vmax.f32 %v1012, 0.0
    %v1027 = vmax.f32 %v1017, 0.0
    %v1029 = vsel %vm364, %v1020, 0
    %v1032 = vsel %vm364, %v1021, 0
    %v1035 = vsel %vm364, %v1022, 0
    %v1038 = vsel %vm364, %v1023, 0
    %v1041 = vsel %vm364, %v1024, 0
    %v1044 = vsel %vm364, %v1025, 0
    %v1047 = vsel %vm364, %v1026, 0
    %v1050 = vsel %vm364, %v1027, 0
    %1052 = vmatprep.subr.mxu0 0.0
    %1053 = vmatpush1.msra.mxu0 0.0
    %1054 = vmatprep.subr.mxu0 0.0
    %1055 = vmatpush1.msra.mxu0 0.0
    %1056 = vmatprep.subr.mxu0 0.0
    %1057 = vmatpush1.msra.mxu0 0.0
    %1058 = vmatprep.subr.mxu0 0.0
    %1059 = vmatpush1.msra.mxu0 0.0
    %1060 = vmatprep.subr.mxu0 0.0
    %1061 = vmatpush1.msra.mxu0 0.0
    %1062 = vmatprep.subr.mxu0 0.0
    %1063 = vmatpush1.msra.mxu0 0.0
    %1064 = vmatprep.subr.mxu0 0.0
    %1065 = vmatpush1.msra.mxu0 0.0
    %1066 = vmatprep.subr.mxu0 0.0
    %1067 = vmatpush1.msra.mxu0 0.0
    %1068 = vmatprep.subr.mxu0 0.0
    %1069 = vmatpush1.msra.mxu0 %v53
    %1070 = vmatprep.subr.mxu0 0.0
    %1071 = vmatpush1.msra.mxu0 %v52
    %1072 = vmatprep.subr.mxu0 0.0
    %1073 = vmatpush1.msra.mxu0 %v51
    %1074 = vmatprep.subr.mxu0 0.0
    %1075 = vmatpush1.msra.mxu0 %v50
    %1076 = vmatprep.subr.mxu0 0.0
    %1077 = vmatpush1.msra.mxu0 %v49
    %1078 = vmatprep.subr.mxu0 0.0
    %1079 = vmatpush1.msra.mxu0 %v48
    %1080 = vmatprep.subr.mxu0 0.0
    %1081 = vmatpush1.msra.mxu0 %v47
    %1082 = vmatprep.subr.mxu0 0.0
    %1083 = vmatpush1.msra.mxu0 %v46
    %1084 = vmatprep.subr.mxu0 0.0
    %1085 = vmatpush2.msra.mxu0 0.0
    %1086 = vmatprep.subr.mxu0 0.0
    %1087 = vmatpush2.msra.mxu0 0.0
    %1088 = vmatprep.subr.mxu0 0.0
    %1089 = vmatpush2.msra.mxu0 0.0
    %1090 = vmatprep.subr.mxu0 0.0
    %1091 = vmatpush2.msra.mxu0 0.0
    %1092 = vmatprep.subr.mxu0 0.0
    %1093 = vmatpush2.msra.mxu0 0.0
    %1094 = vmatprep.subr.mxu0 0.0
    %1095 = vmatpush2.msra.mxu0 0.0
    %1096 = vmatprep.subr.mxu0 0.0
    %1097 = vmatpush2.msra.mxu0 0.0
    %1098 = vmatprep.subr.mxu0 0.0
    %1099 = vmatpush2.msra.mxu0 0.0
    %1100 = vmatprep.subr.mxu0 0.0
    %1101 = vmatpush2.msra.mxu0 0.0
    %1102 = vmatprep.subr.mxu0 0.0
    %1103 = vmatpush2.msra.mxu0 0.0
    %1104 = vmatprep.subr.mxu0 0.0
    %1105 = vmatpush2.msra.mxu0 0.0
    %1106 = vmatprep.subr.mxu0 0.0
    %1107 = vmatpush2.msra.mxu0 0.0
    %1108 = vmatprep.subr.mxu0 0.0
    %1109 = vmatpush2.msra.mxu0 0.0
    %1110 = vmatprep.subr.mxu0 0.0
    %1111 = vmatpush2.msra.mxu0 0.0
    %1112 = vmatprep.subr.mxu0 0.0
    %1113 = vmatpush2.msra.mxu0 0.0
    %1114 = vmatprep.subr.mxu0 0.0
    %1115 = vmatpush2.msra.mxu0 0.0
    %1116 = vmatprep.mubr.f32.mxu0 0.0
    %1117 = vmatmul.mubr.f32.gmra.mxu0 %v1029
    %v1118 = vpop.f32.mrf.mxu0
    %v1119 = vadd.f32 0.0, %v1118
    %v1120 = vpop.f32.mrf.mxu0
    %1121 = vmatprep.mubr.f32.mxu0 0.0
    %1122 = vmatmul.mubr.f32.gmra.mxu0 %v1032
    %v1123 = vpop.f32.mrf.mxu0
    %v1124 = vadd.f32 0.0, %v1123
    %v1125 = vpop.f32.mrf.mxu0
    %1126 = vmatprep.mubr.f32.mxu0 0.0
    %1127 = vmatmul.mubr.f32.gmra.mxu0 %v1035
    %v1128 = vpop.f32.mrf.mxu0
    %v1129 = vadd.f32 0.0, %v1128
    %v1130 = vpop.f32.mrf.mxu0
    %1131 = vmatprep.mubr.f32.mxu0 0.0
    %1132 = vmatmul.mubr.f32.gmra.mxu0 %v1038
    %v1133 = vpop.f32.mrf.mxu0
    %v1134 = vadd.f32 0.0, %v1133
    %v1135 = vpop.f32.mrf.mxu0
    %1136 = vmatprep.mubr.f32.mxu0 0.0
    %1137 = vmatmul.mubr.f32.gmra.mxu0 %v1041
    %v1138 = vpop.f32.mrf.mxu0
    %v1139 = vadd.f32 0.0, %v1138
    %v1140 = vpop.f32.mrf.mxu0
    %1141 = vmatprep.mubr.f32.mxu0 0.0
    %1142 = vmatmul.mubr.f32.gmra.mxu0 %v1044
    %v1143 = vpop.f32.mrf.mxu0
    %v1144 = vadd.f32 0.0, %v1143
    %v1145 = vpop.f32.mrf.mxu0
    %1146 = vmatprep.mubr.f32.mxu0 0.0
    %1147 = vmatmul.mubr.f32.gmra.mxu0 %v1047
    %v1148 = vpop.f32.mrf.mxu0
    %v1149 = vadd.f32 0.0, %v1148
    %v1150 = vpop.f32.mrf.mxu0
    %1151 = vmatprep.mubr.f32.mxu0 0.0
    %1152 = vmatmul.mubr.f32.gmra.mxu0 %v1050
    %v1153 = vpop.f32.mrf.mxu0
    %v1154 = vadd.f32 0.0, %v1153
    %v1155 = vpop.f32.mrf.mxu0
    %1156 = vdwg.mxu0
    %v1158 = vcombine.high %v446, %v446
    %v1160 = vunpack.c.l.s4 1966171168
    %v1161 = vunpack.c.0.s8 %v1160
    %v1162 = vlaneseq
    %v1163 = vshrl.u32 %v1162, 7
    %v1164 = vsub.s32 %v1161, %v1163
    %v1165 = vrot.slane %v446, %v1164
    %v1167 = vunpack.c.l.s4 1966171168
    %v1168 = vunpack.c.0.s8 %v1167
    %v1169 = vlaneseq
    %v1170 = vshrl.u32 %v1169, 7
    %v1171 = vsub.s32 %v1168, %v1170
    %v1172 = vrot.slane %v1158, %v1171
    %v1173 = vcombine.high %v1165, %v1165
    %v1174 = vcombine.high %v1172, %v1172
    %v1176 = vunpack.c.l.s4 1966171168
    %v1177 = vunpack.c.0.s8 %v1176
    %v1178 = vlaneseq
    %v1179 = vshrl.u32 %v1178, 7
    %v1180 = vsub.s32 %v1177, %v1179
    %v1181 = vrot.slane %v1165, %v1180
    %v1183 = vunpack.c.l.s4 1966171168
    %v1184 = vunpack.c.0.s8 %v1183
    %v1185 = vlaneseq
    %v1186 = vshrl.u32 %v1185, 7
    %v1187 = vsub.s32 %v1184, %v1186
    %v1188 = vrot.slane %v1172, %v1187
    %v1190 = vunpack.c.l.s4 1966171168
    %v1191 = vunpack.c.0.s8 %v1190
    %v1192 = vlaneseq
    %v1193 = vshrl.u32 %v1192, 7
    %v1194 = vsub.s32 %v1191, %v1193
    %v1195 = vrot.slane %v1173, %v1194
    %v1197 = vunpack.c.l.s4 1966171168
    %v1198 = vunpack.c.0.s8 %v1197
    %v1199 = vlaneseq
    %v1200 = vshrl.u32 %v1199, 7
    %v1201 = vsub.s32 %v1198, %v1200
    %v1202 = vrot.slane %v1174, %v1201
    %v1203 = vcombine.high %v1181, %v1181
    %v1204 = vcombine.high %v1188, %v1188
    %v1205 = vcombine.high %v1195, %v1195
    %v1206 = vcombine.high %v1202, %v1202
    %v1207 = vlaneseq
    %v1208 = vshrl.u32 %v1207, 7
    %v1209 = vsub.s32 0, %v1208
    %v1210 = vrot.slane %v1181, %v1209
    %v1211 = vlaneseq
    %v1212 = vshrl.u32 %v1211, 7
    %v1213 = vsub.s32 0, %v1212
    %v1214 = vrot.slane %v1195, %v1213
    %v1215 = vlaneseq
    %v1216 = vshrl.u32 %v1215, 7
    %v1217 = vsub.s32 0, %v1216
    %v1218 = vrot.slane %v1203, %v1217
    %v1219 = vlaneseq
    %v1220 = vshrl.u32 %v1219, 7
    %v1221 = vsub.s32 0, %v1220
    %v1222 = vrot.slane %v1205, %v1221
    %v1223 = vlaneseq
    %v1224 = vshrl.u32 %v1223, 7
    %v1225 = vsub.s32 0, %v1224
    %v1226 = vrot.slane %v1188, %v1225
    %v1227 = vlaneseq
    %v1228 = vshrl.u32 %v1227, 7
    %v1229 = vsub.s32 0, %v1228
    %v1230 = vrot.slane %v1202, %v1229
    %v1231 = vlaneseq
    %v1232 = vshrl.u32 %v1231, 7
    %v1233 = vsub.s32 0, %v1232
    %v1234 = vrot.slane %v1204, %v1233
    %v1235 = vlaneseq
    %v1236 = vshrl.u32 %v1235, 7
    %v1237 = vsub.s32 0, %v1236
    %v1238 = vrot.slane %v1206, %v1237
    %v1247 = vadd.f32 %v1210, %v448
    %v1248 = vadd.f32 %v1214, %v448
    %v1249 = vadd.f32 %v1218, %v448
    %v1250 = vadd.f32 %v1222, %v448
    %v1251 = vadd.f32 %v1226, %v448
    %v1252 = vadd.f32 %v1230, %v448
    %v1253 = vadd.f32 %v1234, %v448
    %v1254 = vadd.f32 %v1238, %v448
    %v1255 = vadd.f32 %v446, %v34
    %v1257 = vcombine.high %v1255, %v1255
    %v1259 = vunpack.c.l.s4 1966171168
    %v1260 = vunpack.c.0.s8 %v1259
    %v1261 = vlaneseq
    %v1262 = vshrl.u32 %v1261, 7
    %v1263 = vsub.s32 %v1260, %v1262
    %v1264 = vrot.slane %v1255, %v1263
    %v1266 = vunpack.c.l.s4 1966171168
    %v1267 = vunpack.c.0.s8 %v1266
    %v1268 = vlaneseq
    %v1269 = vshrl.u32 %v1268, 7
    %v1270 = vsub.s32 %v1267, %v1269
    %v1271 = vrot.slane %v1257, %v1270
    %v1272 = vcombine.high %v1264, %v1264
    %v1273 = vcombine.high %v1271, %v1271
    %v1275 = vunpack.c.l.s4 1966171168
    %v1276 = vunpack.c.0.s8 %v1275
    %v1277 = vlaneseq
    %v1278 = vshrl.u32 %v1277, 7
    %v1279 = vsub.s32 %v1276, %v1278
    %v1280 = vrot.slane %v1264, %v1279
    %v1282 = vunpack.c.l.s4 1966171168
    %v1283 = vunpack.c.0.s8 %v1282
    %v1284 = vlaneseq
    %v1285 = vshrl.u32 %v1284, 7
    %v1286 = vsub.s32 %v1283, %v1285
    %v1287 = vrot.slane %v1271, %v1286
    %v1289 = vunpack.c.l.s4 1966171168
    %v1290 = vunpack.c.0.s8 %v1289
    %v1291 = vlaneseq
    %v1292 = vshrl.u32 %v1291, 7
    %v1293 = vsub.s32 %v1290, %v1292
    %v1294 = vrot.slane %v1272, %v1293
    %v1296 = vunpack.c.l.s4 1966171168
    %v1297 = vunpack.c.0.s8 %v1296
    %v1298 = vlaneseq
    %v1299 = vshrl.u32 %v1298, 7
    %v1300 = vsub.s32 %v1297, %v1299
    %v1301 = vrot.slane %v1273, %v1300
    %v1302 = vcombine.high %v1280, %v1280
    %v1303 = vcombine.high %v1287, %v1287
    %v1304 = vcombine.high %v1294, %v1294
    %v1305 = vcombine.high %v1301, %v1301
    %v1306 = vlaneseq
    %v1307 = vshrl.u32 %v1306, 7
    %v1308 = vsub.s32 0, %v1307
    %v1309 = vrot.slane %v1280, %v1308
    %v1310 = vlaneseq
    %v1311 = vshrl.u32 %v1310, 7
    %v1312 = vsub.s32 0, %v1311
    %v1313 = vrot.slane %v1294, %v1312
    %v1314 = vlaneseq
    %v1315 = vshrl.u32 %v1314, 7
    %v1316 = vsub.s32 0, %v1315
    %v1317 = vrot.slane %v1302, %v1316
    %v1318 = vlaneseq
    %v1319 = vshrl.u32 %v1318, 7
    %v1320 = vsub.s32 0, %v1319
    %v1321 = vrot.slane %v1304, %v1320
    %v1322 = vlaneseq
    %v1323 = vshrl.u32 %v1322, 7
    %v1324 = vsub.s32 0, %v1323
    %v1325 = vrot.slane %v1287, %v1324
    %v1326 = vlaneseq
    %v1327 = vshrl.u32 %v1326, 7
    %v1328 = vsub.s32 0, %v1327
    %v1329 = vrot.slane %v1301, %v1328
    %v1330 = vlaneseq
    %v1331 = vshrl.u32 %v1330, 7
    %v1332 = vsub.s32 0, %v1331
    %v1333 = vrot.slane %v1303, %v1332
    %v1334 = vlaneseq
    %v1335 = vshrl.u32 %v1334, 7
    %v1336 = vsub.s32 0, %v1335
    %v1337 = vrot.slane %v1305, %v1336
    %v1346 = vadd.f32 %v1309, %v448
    %v1347 = vadd.f32 %v1313, %v448
    %v1348 = vadd.f32 %v1317, %v448
    %v1349 = vadd.f32 %v1321, %v448
    %v1350 = vadd.f32 %v1325, %v448
    %v1351 = vadd.f32 %v1329, %v448
    %v1352 = vadd.f32 %v1333, %v448
    %v1353 = vadd.f32 %v1337, %v448
    %v1354 = vadd.f32 %v1119, %v1247
    %v1355 = vadd.f32 %v1124, %v1248
    %v1356 = vadd.f32 %v1129, %v1249
    %v1357 = vadd.f32 %v1134, %v1250
    %v1358 = vadd.f32 %v1139, %v1251
    %v1359 = vadd.f32 %v1144, %v1252
    %v1360 = vadd.f32 %v1149, %v1253
    %v1361 = vadd.f32 %v1154, %v1254
    %v1362 = vadd.f32 %v1119, %v1346
    %v1363 = vadd.f32 %v1124, %v1347
    %v1364 = vadd.f32 %v1129, %v1348
    %v1365 = vadd.f32 %v1134, %v1349
    %v1366 = vadd.f32 %v1139, %v1350
    %v1367 = vadd.f32 %v1144, %v1351
    %v1368 = vadd.f32 %v1149, %v1352
    %v1369 = vadd.f32 %v1154, %v1353
    %v1370 = vlaneseq
    %v1371 = vand.u32 %v1370, 127
    %v1372 = vlaneseq
    %v1373 = vshrl.u32 %v1372, 7
    %vm1374 = vcmp.eq.s32.totalorder %v1373, 0
    %v1375 = vsel %vm1374, 1, 0
    %vm1376 = vcmp.eq.s32.totalorder %v1375, 1
    %v1377 = vsel %vm1376, %v1354, 0.0
    %v1378 = vsel %vm81, %v1377, 0.0
    %v1379 = vrot.slane %v1378, 4
    %v1380 = vadd.f32 %v1378, %v1379
    %v1381 = vrot.slane %v1380, 2
    %v1382 = vadd.f32 %v1380, %v1381
    %v1383 = vrot.slane %v1382, 1
    %v1384 = vadd.f32 %v1382, %v1383
    %v1385 = vsel %vm1376, %v1362, 0.0
    %v1386 = vsel %vm81, %v1385, 0.0
    %v1387 = vrot.slane %v1386, 4
    %v1388 = vadd.f32 %v1386, %v1387
    %v1389 = vrot.slane %v1388, 2
    %v1390 = vadd.f32 %v1388, %v1389
    %v1391 = vrot.slane %v1390, 1
    %v1392 = vadd.f32 %v1390, %v1391
    %v1393 = vsel %vm81, %v1392, -inf
    %1394 = vmax.xlane.f32.xlu0 %v1393
    %v1395 = vpop.xlane.xlu0 %1394
    %vm1396 = vcmp.ge.f32.partialorder %v1392, %v1395
    %v1397 = vsel %vm1396, %v1371, 8
    %v1398 = vsel %vm81, %v1397, 2147483647
    %v1399 = vand.u32 %v1398, 65535
    %v1400 = vshra.s32 %v1398, 16
    %v1401 = vcvt.s32.f32 %v1399
    %v1402 = vcvt.s32.f32 %v1400
    %1403 = vmin.xlane.f32.xlu0 %v1402
    %v1404 = vpop.xlane.xlu0 %1403
    %vm1405 = vcmp.eq.f32.partialorder %v1402, %v1404
    %v1406 = vsel %vm1405, %v1401, inf
    %1407 = vmin.xlane.f32.xlu0 %v1406
    %v1408 = vpop.xlane.xlu0 %1407
    %v1409 = vcvt.f32.s32 %v1408
    %v1410 = vcvt.f32.s32 %v1404
    %v1411 = vshll.u32 %v1410, 16
    %v1412 = vadd.s32 %v1411, %v1409
    %vm1413 = vcmp.eq.s32.totalorder %v1371, %v1412
    %v1414 = vsel %vm1413, 1, 0
    %v1415 = vcvt.s32.f32 %v1414
    %v1416 = vsel %vm1376, %v1384, 0.0
    %v1417 = vsel %vm1376, %v1415, 0.0
    %vm1418 = vcmp.eq.s32.totalorder %v1373, %v1412
    %v1419 = vsel %vm1418, 1, 0
    %vm1420 = vcmp.eq.s32.totalorder %v1419, 1
    %v1421 = vsel %vm1420, %v1355, 0.0
    %v1422 = vsel %vm81, %v1421, 0.0
    %v1423 = vrot.slane %v1422, 4
    %v1424 = vadd.f32 %v1422, %v1423
    %v1425 = vrot.slane %v1424, 2
    %v1426 = vadd.f32 %v1424, %v1425
    %v1427 = vrot.slane %v1426, 1
    %v1428 = vadd.f32 %v1426, %v1427
    %v1429 = vsel %vm1420, %v1363, 0.0
    %v1430 = vsel %vm81, %v1429, 0.0
    %v1431 = vrot.slane %v1430, 4
    %v1432 = vadd.f32 %v1430, %v1431
    %v1433 = vrot.slane %v1432, 2
    %v1434 = vadd.f32 %v1432, %v1433
    %v1435 = vrot.slane %v1434, 1
    %v1436 = vadd.f32 %v1434, %v1435
    %v1437 = vsel %vm81, %v1436, -inf
    %1438 = vmax.xlane.f32.xlu0 %v1437
    %v1439 = vpop.xlane.xlu0 %1438
    %vm1440 = vcmp.ge.f32.partialorder %v1436, %v1439
    %v1441 = vsel %vm1440, %v1371, 8
    %v1442 = vsel %vm81, %v1441, 2147483647
    %v1443 = vand.u32 %v1442, 65535
    %v1444 = vshra.s32 %v1442, 16
    %v1445 = vcvt.s32.f32 %v1443
    %v1446 = vcvt.s32.f32 %v1444
    %1447 = vmin.xlane.f32.xlu0 %v1446
    %v1448 = vpop.xlane.xlu0 %1447
    %vm1449 = vcmp.eq.f32.partialorder %v1446, %v1448
    %v1450 = vsel %vm1449, %v1445, inf
    %1451 = vmin.xlane.f32.xlu0 %v1450
    %v1452 = vpop.xlane.xlu0 %1451
    %v1453 = vcvt.f32.s32 %v1452
    %v1454 = vcvt.f32.s32 %v1448
    %v1455 = vshll.u32 %v1454, 16
    %v1456 = vadd.s32 %v1455, %v1453
    %vm1457 = vcmp.eq.s32.totalorder %v1371, %v1456
    %v1458 = vsel %vm1457, 1, 0
    %v1459 = vcvt.s32.f32 %v1458
    %vm1460 = vcmp.eq.s32.totalorder %v1373, 1
    %v1461 = vsel %vm1460, 1, 0
    %vm1462 = vcmp.eq.s32.totalorder %v1461, 1
    %v1463 = vsel %vm1462, %v1428, %v1416
    %v1464 = vsel %vm1462, %v1459, %v1417
    %vm1465 = vcmp.eq.s32.totalorder %v1373, %v1456
    %v1466 = vsel %vm1465, 1, 0
    %vm1467 = vcmp.eq.s32.totalorder %v1466, 1
    %v1468 = vsel %vm1467, %v1356, 0.0
    %v1469 = vsel %vm81, %v1468, 0.0
    %v1470 = vrot.slane %v1469, 4
    %v1471 = vadd.f32 %v1469, %v1470
    %v1472 = vrot.slane %v1471, 2
    %v1473 = vadd.f32 %v1471, %v1472
    %v1474 = vrot.slane %v1473, 1
    %v1475 = vadd.f32 %v1473, %v1474
    %v1476 = vsel %vm1467, %v1364, 0.0
    %v1477 = vsel %vm81, %v1476, 0.0
    %v1478 = vrot.slane %v1477, 4
    %v1479 = vadd.f32 %v1477, %v1478
    %v1480 = vrot.slane %v1479, 2
    %v1481 = vadd.f32 %v1479, %v1480
    %v1482 = vrot.slane %v1481, 1
    %v1483 = vadd.f32 %v1481, %v1482
    %v1484 = vsel %vm81, %v1483, -inf
    %1485 = vmax.xlane.f32.xlu0 %v1484
    %v1486 = vpop.xlane.xlu0 %1485
    %vm1487 = vcmp.ge.f32.partialorder %v1483, %v1486
    %v1488 = vsel %vm1487, %v1371, 8
    %v1489 = vsel %vm81, %v1488, 2147483647
    %v1490 = vand.u32 %v1489, 65535
    %v1491 = vshra.s32 %v1489, 16
    %v1492 = vcvt.s32.f32 %v1490
    %v1493 = vcvt.s32.f32 %v1491
    %1494 = vmin.xlane.f32.xlu0 %v1493
    %v1495 = vpop.xlane.xlu0 %1494
    %vm1496 = vcmp.eq.f32.partialorder %v1493, %v1495
    %v1497 = vsel %vm1496, %v1492, inf
    %1498 = vmin.xlane.f32.xlu0 %v1497
    %v1499 = vpop.xlane.xlu0 %1498
    %v1500 = vcvt.f32.s32 %v1499
    %v1501 = vcvt.f32.s32 %v1495
    %v1502 = vshll.u32 %v1501, 16
    %v1503 = vadd.s32 %v1502, %v1500
    %vm1504 = vcmp.eq.s32.totalorder %v1371, %v1503
    %v1505 = vsel %vm1504, 1, 0
    %v1506 = vcvt.s32.f32 %v1505
    %vm1507 = vcmp.eq.s32.totalorder %v1373, 2
    %v1508 = vsel %vm1507, 1, 0
    %vm1509 = vcmp.eq.s32.totalorder %v1508, 1
    %v1510 = vsel %vm1509, %v1475, %v1463
    %v1511 = vsel %vm1509, %v1506, %v1464
    %vm1512 = vcmp.eq.s32.totalorder %v1373, %v1503
    %v1513 = vsel %vm1512, 1, 0
    %vm1514 = vcmp.eq.s32.totalorder %v1513, 1
    %v1515 = vsel %vm1514, %v1357, 0.0
    %v1516 = vsel %vm81, %v1515, 0.0
    %v1517 = vrot.slane %v1516, 4
    %v1518 = vadd.f32 %v1516, %v1517
    %v1519 = vrot.slane %v1518, 2
    %v1520 = vadd.f32 %v1518, %v1519
    %v1521 = vrot.slane %v1520, 1
    %v1522 = vadd.f32 %v1520, %v1521
    %v1523 = vsel %vm1514, %v1365, 0.0
    %v1524 = vsel %vm81, %v1523, 0.0
    %v1525 = vrot.slane %v1524, 4
    %v1526 = vadd.f32 %v1524, %v1525
    %v1527 = vrot.slane %v1526, 2
    %v1528 = vadd.f32 %v1526, %v1527
    %v1529 = vrot.slane %v1528, 1
    %v1530 = vadd.f32 %v1528, %v1529
    %v1531 = vsel %vm81, %v1530, -inf
    %1532 = vmax.xlane.f32.xlu0 %v1531
    %v1533 = vpop.xlane.xlu0 %1532
    %vm1534 = vcmp.ge.f32.partialorder %v1530, %v1533
    %v1535 = vsel %vm1534, %v1371, 8
    %v1536 = vsel %vm81, %v1535, 2147483647
    %v1537 = vand.u32 %v1536, 65535
    %v1538 = vshra.s32 %v1536, 16
    %v1539 = vcvt.s32.f32 %v1537
    %v1540 = vcvt.s32.f32 %v1538
    %1541 = vmin.xlane.f32.xlu0 %v1540
    %v1542 = vpop.xlane.xlu0 %1541
    %vm1543 = vcmp.eq.f32.partialorder %v1540, %v1542
    %v1544 = vsel %vm1543, %v1539, inf
    %1545 = vmin.xlane.f32.xlu0 %v1544
    %v1546 = vpop.xlane.xlu0 %1545
    %v1547 = vcvt.f32.s32 %v1546
    %v1548 = vcvt.f32.s32 %v1542
    %v1549 = vshll.u32 %v1548, 16
    %v1550 = vadd.s32 %v1549, %v1547
    %vm1551 = vcmp.eq.s32.totalorder %v1371, %v1550
    %v1552 = vsel %vm1551, 1, 0
    %v1553 = vcvt.s32.f32 %v1552
    %vm1554 = vcmp.eq.s32.totalorder %v1373, 3
    %v1555 = vsel %vm1554, 1, 0
    %vm1556 = vcmp.eq.s32.totalorder %v1555, 1
    %v1557 = vsel %vm1556, %v1522, %v1510
    %v1558 = vsel %vm1556, %v1553, %v1511
    %vm1559 = vcmp.eq.s32.totalorder %v1373, %v1550
    %v1560 = vsel %vm1559, 1, 0
    %vm1561 = vcmp.eq.s32.totalorder %v1560, 1
    %v1562 = vsel %vm1561, %v1358, 0.0
    %v1563 = vsel %vm81, %v1562, 0.0
    %v1564 = vrot.slane %v1563, 4
    %v1565 = vadd.f32 %v1563, %v1564
    %v1566 = vrot.slane %v1565, 2
    %v1567 = vadd.f32 %v1565, %v1566
    %v1568 = vrot.slane %v1567, 1
    %v1569 = vadd.f32 %v1567, %v1568
    %v1570 = vsel %vm1561, %v1366, 0.0
    %v1571 = vsel %vm81, %v1570, 0.0
    %v1572 = vrot.slane %v1571, 4
    %v1573 = vadd.f32 %v1571, %v1572
    %v1574 = vrot.slane %v1573, 2
    %v1575 = vadd.f32 %v1573, %v1574
    %v1576 = vrot.slane %v1575, 1
    %v1577 = vadd.f32 %v1575, %v1576
    %v1578 = vsel %vm81, %v1577, -inf
    %1579 = vmax.xlane.f32.xlu0 %v1578
    %v1580 = vpop.xlane.xlu0 %1579
    %vm1581 = vcmp.ge.f32.partialorder %v1577, %v1580
    %v1582 = vsel %vm1581, %v1371, 8
    %v1583 = vsel %vm81, %v1582, 2147483647
    %v1584 = vand.u32 %v1583, 65535
    %v1585 = vshra.s32 %v1583, 16
    %v1586 = vcvt.s32.f32 %v1584
    %v1587 = vcvt.s32.f32 %v1585
    %1588 = vmin.xlane.f32.xlu0 %v1587
    %v1589 = vpop.xlane.xlu0 %1588
    %vm1590 = vcmp.eq.f32.partialorder %v1587, %v1589
    %v1591 = vsel %vm1590, %v1586, inf
    %1592 = vmin.xlane.f32.xlu0 %v1591
    %v1593 = vpop.xlane.xlu0 %1592
    %v1594 = vcvt.f32.s32 %v1593
    %v1595 = vcvt.f32.s32 %v1589
    %v1596 = vshll.u32 %v1595, 16
    %v1597 = vadd.s32 %v1596, %v1594
    %vm1598 = vcmp.eq.s32.totalorder %v1371, %v1597
    %v1599 = vsel %vm1598, 1, 0
    %v1600 = vcvt.s32.f32 %v1599
    %vm1601 = vcmp.eq.s32.totalorder %v1373, 4
    %v1602 = vsel %vm1601, 1, 0
    %vm1603 = vcmp.eq.s32.totalorder %v1602, 1
    %v1604 = vsel %vm1603, %v1569, %v1557
    %v1605 = vsel %vm1603, %v1600, %v1558
    %vm1606 = vcmp.eq.s32.totalorder %v1373, %v1597
    %v1607 = vsel %vm1606, 1, 0
    %vm1608 = vcmp.eq.s32.totalorder %v1607, 1
    %v1609 = vsel %vm1608, %v1359, 0.0
    %v1610 = vsel %vm81, %v1609, 0.0
    %v1611 = vrot.slane %v1610, 4
    %v1612 = vadd.f32 %v1610, %v1611
    %v1613 = vrot.slane %v1612, 2
    %v1614 = vadd.f32 %v1612, %v1613
    %v1615 = vrot.slane %v1614, 1
    %v1616 = vadd.f32 %v1614, %v1615
    %v1617 = vsel %vm1608, %v1367, 0.0
    %v1618 = vsel %vm81, %v1617, 0.0
    %v1619 = vrot.slane %v1618, 4
    %v1620 = vadd.f32 %v1618, %v1619
    %v1621 = vrot.slane %v1620, 2
    %v1622 = vadd.f32 %v1620, %v1621
    %v1623 = vrot.slane %v1622, 1
    %v1624 = vadd.f32 %v1622, %v1623
    %v1625 = vsel %vm81, %v1624, -inf
    %1626 = vmax.xlane.f32.xlu0 %v1625
    %v1627 = vpop.xlane.xlu0 %1626
    %vm1628 = vcmp.ge.f32.partialorder %v1624, %v1627
    %v1629 = vsel %vm1628, %v1371, 8
    %v1630 = vsel %vm81, %v1629, 2147483647
    %v1631 = vand.u32 %v1630, 65535
    %v1632 = vshra.s32 %v1630, 16
    %v1633 = vcvt.s32.f32 %v1631
    %v1634 = vcvt.s32.f32 %v1632
    %1635 = vmin.xlane.f32.xlu0 %v1634
    %v1636 = vpop.xlane.xlu0 %1635
    %vm1637 = vcmp.eq.f32.partialorder %v1634, %v1636
    %v1638 = vsel %vm1637, %v1633, inf
    %1639 = vmin.xlane.f32.xlu0 %v1638
    %v1640 = vpop.xlane.xlu0 %1639
    %v1641 = vcvt.f32.s32 %v1640
    %v1642 = vcvt.f32.s32 %v1636
    %v1643 = vshll.u32 %v1642, 16
    %v1644 = vadd.s32 %v1643, %v1641
    %vm1645 = vcmp.eq.s32.totalorder %v1371, %v1644
    %v1646 = vsel %vm1645, 1, 0
    %v1647 = vcvt.s32.f32 %v1646
    %vm1648 = vcmp.eq.s32.totalorder %v1373, 5
    %v1649 = vsel %vm1648, 1, 0
    %vm1650 = vcmp.eq.s32.totalorder %v1649, 1
    %v1651 = vsel %vm1650, %v1616, %v1604
    %v1652 = vsel %vm1650, %v1647, %v1605
    %vm1653 = vcmp.eq.s32.totalorder %v1373, %v1644
    %v1654 = vsel %vm1653, 1, 0
    %vm1655 = vcmp.eq.s32.totalorder %v1654, 1
    %v1656 = vsel %vm1655, %v1360, 0.0
    %v1657 = vsel %vm81, %v1656, 0.0
    %v1658 = vrot.slane %v1657, 4
    %v1659 = vadd.f32 %v1657, %v1658
    %v1660 = vrot.slane %v1659, 2
    %v1661 = vadd.f32 %v1659, %v1660
    %v1662 = vrot.slane %v1661, 1
    %v1663 = vadd.f32 %v1661, %v1662
    %v1664 = vsel %vm1655, %v1368, 0.0
    %v1665 = vsel %vm81, %v1664, 0.0
    %v1666 = vrot.slane %v1665, 4
    %v1667 = vadd.f32 %v1665, %v1666
    %v1668 = vrot.slane %v1667, 2
    %v1669 = vadd.f32 %v1667, %v1668
    %v1670 = vrot.slane %v1669, 1
    %v1671 = vadd.f32 %v1669, %v1670
    %v1672 = vsel %vm81, %v1671, -inf
    %1673 = vmax.xlane.f32.xlu0 %v1672
    %v1674 = vpop.xlane.xlu0 %1673
    %vm1675 = vcmp.ge.f32.partialorder %v1671, %v1674
    %v1676 = vsel %vm1675, %v1371, 8
    %v1677 = vsel %vm81, %v1676, 2147483647
    %v1678 = vand.u32 %v1677, 65535
    %v1679 = vshra.s32 %v1677, 16
    %v1680 = vcvt.s32.f32 %v1678
    %v1681 = vcvt.s32.f32 %v1679
    %1682 = vmin.xlane.f32.xlu0 %v1681
    %v1683 = vpop.xlane.xlu0 %1682
    %vm1684 = vcmp.eq.f32.partialorder %v1681, %v1683
    %v1685 = vsel %vm1684, %v1680, inf
    %1686 = vmin.xlane.f32.xlu0 %v1685
    %v1687 = vpop.xlane.xlu0 %1686
    %v1688 = vcvt.f32.s32 %v1687
    %v1689 = vcvt.f32.s32 %v1683
    %v1690 = vshll.u32 %v1689, 16
    %v1691 = vadd.s32 %v1690, %v1688
    %vm1692 = vcmp.eq.s32.totalorder %v1371, %v1691
    %v1693 = vsel %vm1692, 1, 0
    %v1694 = vcvt.s32.f32 %v1693
    %vm1695 = vcmp.eq.s32.totalorder %v1373, 6
    %v1696 = vsel %vm1695, 1, 0
    %vm1697 = vcmp.eq.s32.totalorder %v1696, 1
    %v1698 = vsel %vm1697, %v1663, %v1651
    %v1699 = vsel %vm1697, %v1694, %v1652
    %vm1700 = vcmp.eq.s32.totalorder %v1373, %v1691
    %v1701 = vsel %vm1700, 1, 0
    %vm1702 = vcmp.eq.s32.totalorder %v1701, 1
    %v1703 = vsel %vm1702, %v1361, 0.0
    %v1704 = vsel %vm81, %v1703, 0.0
    %v1705 = vrot.slane %v1704, 4
    %v1706 = vadd.f32 %v1704, %v1705
    %v1707 = vrot.slane %v1706, 2
    %v1708 = vadd.f32 %v1706, %v1707
    %v1709 = vrot.slane %v1708, 1
    %v1710 = vadd.f32 %v1708, %v1709
    %v1711 = vsel %vm1702, %v1369, 0.0
    %v1712 = vsel %vm81, %v1711, 0.0
    %v1713 = vrot.slane %v1712, 4
    %v1714 = vadd.f32 %v1712, %v1713
    %v1715 = vrot.slane %v1714, 2
    %v1716 = vadd.f32 %v1714, %v1715
    %v1717 = vrot.slane %v1716, 1
    %v1718 = vadd.f32 %v1716, %v1717
    %v1719 = vsel %vm81, %v1718, -inf
    %1720 = vmax.xlane.f32.xlu0 %v1719
    %v1721 = vpop.xlane.xlu0 %1720
    %vm1722 = vcmp.ge.f32.partialorder %v1718, %v1721
    %v1723 = vsel %vm1722, %v1371, 8
    %v1724 = vsel %vm81, %v1723, 2147483647
    %v1725 = vand.u32 %v1724, 65535
    %v1726 = vshra.s32 %v1724, 16
    %v1727 = vcvt.s32.f32 %v1725
    %v1728 = vcvt.s32.f32 %v1726
    %1729 = vmin.xlane.f32.xlu0 %v1728
    %v1730 = vpop.xlane.xlu0 %1729
    %vm1731 = vcmp.eq.f32.partialorder %v1728, %v1730
    %v1732 = vsel %vm1731, %v1727, inf
    %1733 = vmin.xlane.f32.xlu0 %v1732
    %v1734 = vpop.xlane.xlu0 %1733
    %v1735 = vcvt.f32.s32 %v1734
    %v1736 = vcvt.f32.s32 %v1730
    %v1737 = vshll.u32 %v1736, 16
    %v1738 = vadd.s32 %v1737, %v1735
    %vm1739 = vcmp.eq.s32.totalorder %v1371, %v1738
    %v1740 = vsel %vm1739, 1, 0
    %v1741 = vcvt.s32.f32 %v1740
    %vm1742 = vcmp.eq.s32.totalorder %v1373, 7
    %v1743 = vsel %vm1742, 1, 0
    %vm1744 = vcmp.eq.s32.totalorder %v1743, 1
    %v1745 = vsel %vm1744, %v1710, %v1698
    %v1746 = vsel %vm1744, %v1741, %v1699
    %1747 = vst.msk [vmem:[#allocation2] sm:$0xff] %vm81, %v1745
    %1748 = vst.msk [vmem:[#allocation4] sm:$0xff] %vm81, %v1746
    // Predicated region
    $region34: #{tpu_custom_call.1} parent=1 // pred_check
      _
    $region35: #{tpu_custom_call.1} parent=1 // pred_check_branch
      %1750 = sbr.rel (0) target = $region37
    $region36: #{tpu_custom_call.1} parent=1 // pred_region
      %s1752 = ssub.s32 128, 128
      %1753 = vsyncadd [#allocation3], %s1752
      %s1755 = sshll.u32 [#allocation2], 4
      %s1756 = int_to_ptr.vmem [resolvable:$true] %s1755
      %1758 = dma.vmem_to_hbm [thread:$0]  %s1756, 128, %s8, [#allocation3]
    $region37: #{tpu_custom_call.1} parent=1 // pred_fallthru
      _
    // Predicated region
    $region38: #{tpu_custom_call.1} parent=1 // pred_check
      _
    $region39: #{tpu_custom_call.1} parent=1 // pred_check_branch
      %1760 = sbr.rel (0) target = $region41
    $region40: #{tpu_custom_call.1} parent=1 // pred_region
      %s1762 = ssub.s32 128, 128
      %1763 = vsyncadd [#allocation5], %s1762
      %s1765 = sshll.u32 [#allocation4], 4
      %s1766 = int_to_ptr.vmem [resolvable:$true] %s1765
      %1768 = dma.vmem_to_hbm [thread:$0]  %s1766, 128, %s9, [#allocation5]
    $region41: #{tpu_custom_call.1} parent=1 // pred_fallthru
      _
    // Predicated region
    $region42: #{tpu_custom_call.1} parent=1 // pred_check
      _
    $region43: #{tpu_custom_call.1} parent=1 // pred_check_branch
      %1770 = sbr.rel (0) target = $region45
    $region44: #{tpu_custom_call.1} parent=1 // pred_region
      %1771 = dma.done [#allocation3], 128
    $region45: #{tpu_custom_call.1} parent=1 // pred_fallthru
      _
    // Predicated region
    $region46: #{tpu_custom_call.1} parent=1 // pred_check
      _
    $region47: #{tpu_custom_call.1} parent=1 // pred_check_branch
      %1773 = sbr.rel (0) target = $region49
    $region48: #{tpu_custom_call.1} parent=1 // pred_region
      %1774 = dma.done [#allocation5], 128
    $region49: #{tpu_custom_call.1} parent=1 // pred_fallthru
      _
    %1775 = vsyncpa [#allocation3], 1
    %1776 = vsyncpa [#allocation5], 1

</llo_original>
